<compile_context>
chip_gen: v7x
topology: tpu7x:2x2x1
jax: 0.10.0
libtpu: 0.0.40
codegen_flags: <defaults>
</compile_context>

<pallas_src>
import functools

import jax
import jax.numpy as jnp
from jax.experimental import pallas as pl
from jax.experimental.pallas import tpu as pltpu

LN_EPS = 1e-5  # PyTorch default for nn.LayerNorm / TransformerEncoderLayer

_MATMUL_ROW_CAP = 512   # max row-tile for the projection matmuls
_ATTN_Q_CAP = 128       # max query-tile for attention

_vmem_limit_cached = None


def _vmem_limit():
    """Generation-aware VMEM request: ~75% of physical, clamped to [32, 100] MiB."""
    global _vmem_limit_cached
    if _vmem_limit_cached is None:
        try:
            cap = int(pltpu.get_tpu_info().vmem_capacity_bytes)
            _vmem_limit_cached = max(32 << 20, min(int(cap * 0.75), 100 << 20))
        except Exception:  # pragma: no cover - conservative fallback
            _vmem_limit_cached = 48 << 20
    return _vmem_limit_cached


def _round_up(x, m):
    return ((x + m - 1) // m) * m


def _row_tile(m, cap):
    """Pick a row tile. Returns (tile, padded_rows). Prefers a divisor of m."""
    if m <= cap:
        return m, m                       # full block: any size is legal
    t = (cap // 8) * 8
    while t >= 8:
        if m % t == 0:
            return t, m                   # multiple-of-8 divisor, no padding
        t -= 8
    return cap, _round_up(m, cap)         # rare fallback: pad rows


# ----------------------------------------------------------------------------
# In-kernel helpers (f32 math)
# ----------------------------------------------------------------------------
def _erf_approx(x):
    # Abramowitz & Stegun 7.1.26, max abs error ~1.5e-7. VPU/EUP ops only.
    a = jnp.abs(x)
    t = 1.0 / (1.0 + 0.3275911 * a)
    poly = t * (0.254829592 + t * (-0.284496736 + t * (1.421413741
                + t * (-1.453152027 + t * 1.061405429))))
    r = 1.0 - poly * jnp.exp(-a * a)
    return jnp.where(x >= 0, r, -r)


def _gelu_exact(x):
    return 0.5 * x * (1.0 + _erf_approx(x * 0.7071067811865476))


# ----------------------------------------------------------------------------
# Kernel 1: single-pass matmul + bias (+ optional fused GELU)
#   full-K, full-N blocks -> no K grid axis, no accumulator scratch
# ----------------------------------------------------------------------------
def _matmul_bias_kernel(x_ref, w_ref, b_ref, o_ref, *, activation):
    x = x_ref[...]
    if x.dtype != w_ref.dtype:
        x = x.astype(w_ref.dtype)         # cast activation in-kernel (no HBM op)
    y = jnp.dot(x, w_ref[...], preferred_element_type=jnp.float32) + b_ref[...]
    if activation == "gelu":
        y = _gelu_exact(y)
    o_ref[...] = y.astype(o_ref.dtype)


def matmul_bias(x, w, b, *, activation=None, out_dtype=None, row_cap=_MATMUL_ROW_CAP):
    """out = act(x @ w + b). Weights/bias are assumed pre-cast (bf16 / f32 (1,N))."""
    M, K = x.shape
    K2, N = w.shape
    assert K == K2
    if out_dtype is None:
        out_dtype = w.dtype

    tm, Mp = _row_tile(M, row_cap)
    xp = x if Mp == M else jnp.pad(x, ((0, Mp - M), (0, 0)))

    out = pl.pallas_call(
        functools.partial(_matmul_bias_kernel, activation=activation),
        out_shape=jax.ShapeDtypeStruct((Mp, N), out_dtype),
        grid=(Mp // tm,),
        in_specs=[
            pl.BlockSpec((tm, K), lambda i: (i, 0)),
            pl.BlockSpec((K, N), lambda i: (0, 0)),   # whole weight, DMA'd once
            pl.BlockSpec((1, N), lambda i: (0, 0)),
        ],
        out_specs=pl.BlockSpec((tm, N), lambda i: (i, 0)),
        compiler_params=pltpu.CompilerParams(
            dimension_semantics=("parallel",),
            vmem_limit_bytes=_vmem_limit(),
        ),
    )(xp, w, b)
    return out if Mp == M else out[:M]


# ----------------------------------------------------------------------------
# Kernel 2: matmul + bias + residual + LayerNorm, fully fused epilogue
#   full-K, full-N -> LN reduction sees exact feature rows (no masking needed)
# ----------------------------------------------------------------------------
def _matmul_res_ln_kernel(x_ref, w_ref, b_ref, r_ref, g_ref, bt_ref, o_ref):
    x = x_ref[...]
    if x.dtype != w_ref.dtype:
        x = x.astype(w_ref.dtype)
    y = jnp.dot(x, w_ref[...], preferred_element_type=jnp.float32)
    y = y + b_ref[...] + r_ref[...].astype(jnp.float32)
    mean = jnp.mean(y, axis=-1, keepdims=True)
    c = y - mean
    var = jnp.mean(c * c, axis=-1, keepdims=True)     # biased (torch LayerNorm)
    o_ref[...] = (c * jax.lax.rsqrt(var + LN_EPS) * g_ref[...]
                  + bt_ref[...]).astype(o_ref.dtype)


def matmul_res_layernorm(x, w, b, res, gamma, beta, *, out_dtype=None,
                         row_cap=_MATMUL_ROW_CAP):
    """LayerNorm(x @ w + b + res) * gamma + beta, one pass."""
    M, K = x.shape
    K2, N = w.shape
    assert K == K2 and res.shape == (M, N)
    if out_dtype is None:
        out_dtype = w.dtype

    tm, Mp = _row_tile(M, row_cap)
    if Mp != M:
        x = jnp.pad(x, ((0, Mp - M), (0, 0)))
        res = jnp.pad(res, ((0, Mp - M), (0, 0)))

    out = pl.pallas_call(
        _matmul_res_ln_kernel,
        out_shape=jax.ShapeDtypeStruct((Mp, N), out_dtype),
        grid=(Mp // tm,),
        in_specs=[
            pl.BlockSpec((tm, K), lambda i: (i, 0)),
            pl.BlockSpec((K, N), lambda i: (0, 0)),
            pl.BlockSpec((1, N), lambda i: (0, 0)),
            pl.BlockSpec((tm, N), lambda i: (i, 0)),
            pl.BlockSpec((1, N), lambda i: (0, 0)),
            pl.BlockSpec((1, N), lambda i: (0, 0)),
        ],
        out_specs=pl.BlockSpec((tm, N), lambda i: (i, 0)),
        compiler_params=pltpu.CompilerParams(
            dimension_semantics=("parallel",),
            vmem_limit_bytes=_vmem_limit(),
        ),
    )(x, w, b, res, gamma, beta)
    return out if Mp == M else out[:M]


# ----------------------------------------------------------------------------
# Kernel 3: multi-head attention on head-major q/k/v, grid = (B, H, q_blocks)
# ----------------------------------------------------------------------------
def _attn_kernel(q_ref, k_ref, v_ref, o_ref, *, s_valid, scale):
    q = (q_ref[0, 0].astype(jnp.float32) * scale).astype(q_ref.dtype)  # (tq, dh)
    k = k_ref[0, 0]                                                     # (Sp, dh)
    v = v_ref[0, 0]                                                     # (Sp, dh)

    s = jax.lax.dot_general(q, k, (((1,), (1,)), ((), ())),
                            preferred_element_type=jnp.float32)         # (tq, Sp)
    if s_valid < k.shape[0]:                       # mask padded key rows (static)
        col = jax.lax.broadcasted_iota(jnp.int32, s.shape, 1)
        s = jnp.where(col < s_valid, s, -1e30)

    m = jnp.max(s, axis=-1, keepdims=True)
    p = jnp.exp(s - m)
    denom = jnp.sum(p, axis=-1, keepdims=True)
    out = jnp.dot(p.astype(v.dtype), v, preferred_element_type=jnp.float32)
    # Fold the softmax normalisation into the (tq, dh) output (not the (tq, Sp) p).
    out = out * pl.reciprocal(denom, approx=True)
    o_ref[0, 0] = out.astype(o_ref.dtype)


def mha_attention(q, k, v, *, s_valid):
    """q/k/v: (B, H, Sp, dh) head-major -> (B, H, Sp, dh) attention output."""
    B, H, Sp, dh = q.shape
    tq, _ = _row_tile(Sp, _ATTN_Q_CAP)             # Sp is a multiple of 8 -> divides
    kern = functools.partial(_attn_kernel, s_valid=s_valid, scale=dh ** -0.5)
    return pl.pallas_call(
        kern,
        out_shape=jax.ShapeDtypeStruct((B, H, Sp, dh), q.dtype),
        grid=(B, H, Sp // tq),
        in_specs=[
            pl.BlockSpec((1, 1, tq, dh), lambda b, h, i: (b, h, i, 0)),
            pl.BlockSpec((1, 1, Sp, dh), lambda b, h, i: (b, h, 0, 0)),  # resident K
            pl.BlockSpec((1, 1, Sp, dh), lambda b, h, i: (b, h, 0, 0)),  # resident V
        ],
        out_specs=pl.BlockSpec((1, 1, tq, dh), lambda b, h, i: (b, h, i, 0)),
        compiler_params=pltpu.CompilerParams(
            dimension_semantics=("parallel", "parallel", "parallel"),
            vmem_limit_bytes=_vmem_limit(),
        ),
    )(q, k, v)


# ----------------------------------------------------------------------------
# Kernel 4: MLP head — LayerNorm prologue fused into Linear (+GELU)
# ----------------------------------------------------------------------------
def _ln_matmul_bias_kernel(x_ref, g_ref, bt_ref, w_ref, b_ref, o_ref, *, activation):
    x = x_ref[...].astype(jnp.float32)
    mean = jnp.mean(x, axis=-1, keepdims=True)
    c = x - mean
    var = jnp.mean(c * c, axis=-1, keepdims=True)
    xn = c * jax.lax.rsqrt(var + LN_EPS) * g_ref[...] + bt_ref[...]
    y = jnp.dot(xn.astype(w_ref.dtype), w_ref[...],
                preferred_element_type=jnp.float32) + b_ref[...]
    if activation == "gelu":
        y = _gelu_exact(y)
    o_ref[...] = y.astype(o_ref.dtype)


def layernorm_matmul_bias(x, gamma, beta, w, b, *, activation=None,
                          out_dtype=jnp.float32, row_cap=_MATMUL_ROW_CAP):
    M, K = x.shape
    K2, N = w.shape
    assert K == K2
    tm, Mp = _row_tile(M, row_cap)
    xp = x if Mp == M else jnp.pad(x, ((0, Mp - M), (0, 0)))
    out = pl.pallas_call(
        functools.partial(_ln_matmul_bias_kernel, activation=activation),
        out_shape=jax.ShapeDtypeStruct((Mp, N), out_dtype),
        grid=(Mp // tm,),
        in_specs=[
            pl.BlockSpec((tm, K), lambda i: (i, 0)),
            pl.BlockSpec((1, K), lambda i: (0, 0)),
            pl.BlockSpec((1, K), lambda i: (0, 0)),
            pl.BlockSpec((K, N), lambda i: (0, 0)),
            pl.BlockSpec((1, N), lambda i: (0, 0)),
        ],
        out_specs=pl.BlockSpec((tm, N), lambda i: (i, 0)),
        compiler_params=pltpu.CompilerParams(
            dimension_semantics=("parallel",),
            vmem_limit_bytes=_vmem_limit(),
        ),
    )(xp, gamma, beta, w, b)
    return out if Mp == M else out[:M]


# ----------------------------------------------------------------------------
# Plain-JAX glue
# ----------------------------------------------------------------------------
def make_patches(imgs, patch_size):
    """Same semantics as the torch helper: (B,C,H,W) -> (B, K*K, C*ps*ps)."""
    b, c, s, _ = imgs.shape
    k = s // patch_size
    x = imgs.reshape(b, c, k, patch_size, k, patch_size)
    x = x.transpose(0, 2, 4, 1, 3, 5)
    x = x.reshape(b, k * k, c * patch_size * patch_size)
    return x, k * k, c * patch_size * patch_size


def init_params(key, *, patch_size, input_shape, embed_dim, out_dim,
                num_transformers, mlp_dim):
    """Torch-like f32 parameters."""
    c, s, _ = input_shape
    n_patches = (s // patch_size) ** 2
    patch_dim = c * patch_size * patch_size
    keys = iter(jax.random.split(key, 8 + 8 * num_transformers))

    def nrm(shape, scale=0.02):
        return scale * jax.random.normal(next(keys), shape, jnp.float32)

    params = {
        "proj_w": nrm((patch_dim, embed_dim)),  # Linear(patch_dim, E, bias=False)
        "cls_token": jax.random.normal(next(keys), (embed_dim,), jnp.float32),
        "pos_embed": jax.random.normal(
            next(keys), (n_patches + 1, embed_dim), jnp.float32),
        "layers": [],
        "head_ln_g": jnp.ones((embed_dim,), jnp.float32),
        "head_ln_b": jnp.zeros((embed_dim,), jnp.float32),
        "head_w": nrm((embed_dim, out_dim)),
        "head_b": jnp.zeros((out_dim,), jnp.float32),
    }
    for _ in range(num_transformers):
        params["layers"].append({
            # NOTE: stored as (in, out); torch checkpoints would need a transpose.
            "in_proj_w": nrm((embed_dim, 3 * embed_dim)),
            "in_proj_b": jnp.zeros((3 * embed_dim,), jnp.float32),
            "out_proj_w": nrm((embed_dim, embed_dim)),
            "out_proj_b": jnp.zeros((embed_dim,), jnp.float32),
            "lin1_w": nrm((embed_dim, mlp_dim)),
            "lin1_b": jnp.zeros((mlp_dim,), jnp.float32),
            "lin2_w": nrm((mlp_dim, embed_dim)),
            "lin2_b": jnp.zeros((embed_dim,), jnp.float32),
            "ln1_g": jnp.ones((embed_dim,), jnp.float32),
            "ln1_b": jnp.zeros((embed_dim,), jnp.float32),
            "ln2_g": jnp.ones((embed_dim,), jnp.float32),
            "ln2_b": jnp.zeros((embed_dim,), jnp.float32),
        })
    return params


def prepare_params(params, compute_dtype=jnp.bfloat16):
    """One-time cast/layout of parameters so the forward does no per-layer
    astype/pad work on weights (review item: avoid re-casting every call)."""
    def wcast(w):
        return w.astype(compute_dtype)

    def vrow(v):
        return v.reshape(1, -1).astype(jnp.float32)

    embed_dim = params["proj_w"].shape[1]
    prep = {
        "proj_w": wcast(params["proj_w"]),
        "proj_b": jnp.zeros((1, embed_dim), jnp.float32),   # proj has no bias
        "cls_token": params["cls_token"].astype(jnp.float32),
        "pos_embed": params["pos_embed"].astype(jnp.float32),
        "head_ln_g": vrow(params["head_ln_g"]),
        "head_ln_b": vrow(params["head_ln_b"]),
        "head_w": wcast(params["head_w"]),
        "head_b": vrow(params["head_b"]),
        "layers": [],
    }
    for lp in params["layers"]:
        prep["layers"].append({
            "in_proj_w": wcast(lp["in_proj_w"]),
            "in_proj_b": vrow(lp["in_proj_b"]),
            "out_proj_w": wcast(lp["out_proj_w"]),
            "out_proj_b": vrow(lp["out_proj_b"]),
            "lin1_w": wcast(lp["lin1_w"]),
            "lin1_b": vrow(lp["lin1_b"]),
            "lin2_w": wcast(lp["lin2_w"]),
            "lin2_b": vrow(lp["lin2_b"]),
            "ln1_g": vrow(lp["ln1_g"]),
            "ln1_b": vrow(lp["ln1_b"]),
            "ln2_g": vrow(lp["ln2_g"]),
            "ln2_b": vrow(lp["ln2_b"]),
        })
    return prep


def vision_transformer_forward(p, img, *, patch_size, num_heads,
                               compute_dtype=jnp.bfloat16):
    B = img.shape[0]
    x, n_patches, patch_dim = make_patches(img, patch_size)     # (B, NP, PD) f32
    E = p["proj_w"].shape[1]
    H = num_heads
    dh = E // H

    # Patch projection (Linear, no bias); cast to bf16 happens inside the kernel.
    x_emb = matmul_bias(x.reshape(B * n_patches, patch_dim), p["proj_w"],
                        p["proj_b"], out_dtype=jnp.float32)
    x_emb = x_emb.reshape(B, n_patches, E)

    # Prepend CLS token, add positional embedding in f32, pad sequence once to a
    # multiple of 8 rows, then drop to compute dtype for the whole encoder stack.
    ct = jnp.broadcast_to(p["cls_token"], (B, 1, E))
    z = jnp.concatenate([ct, x_emb], axis=1) + p["pos_embed"][None, :, :]
    S = n_patches + 1
    Sp = _round_up(S, 8)
    if Sp != S:
        z = jnp.pad(z, ((0, 0), (0, Sp - S), (0, 0)))
    # dropout -> identity (eval mode)
    z2d = z.astype(compute_dtype).reshape(B * Sp, E)             # (B*Sp, E)

    for lp in p["layers"]:
        # --- self attention (post-LN torch TransformerEncoderLayer) ---
        qkv = matmul_bias(z2d, lp["in_proj_w"], lp["in_proj_b"])         # (B*Sp, 3E)
        qkv = qkv.reshape(B, Sp, 3, H, dh).transpose(2, 0, 3, 1, 4)      # (3,B,H,Sp,dh)
        attn = mha_attention(qkv[0], qkv[1], qkv[2], s_valid=S)          # (B,H,Sp,dh)
        attn2d = attn.transpose(0, 2, 1, 3).reshape(B * Sp, E)
        z2d = matmul_res_layernorm(attn2d, lp["out_proj_w"], lp["out_proj_b"],
                                   z2d, lp["ln1_g"], lp["ln1_b"])

        # --- feed forward (GELU fused into lin1; bias+res+LN fused into lin2) ---
        h = matmul_bias(z2d, lp["lin1_w"], lp["lin1_b"], activation="gelu")
        z2d = matmul_res_layernorm(h, lp["lin2_w"], lp["lin2_b"],
                                   z2d, lp["ln2_g"], lp["ln2_b"])

    # z[0] in seq-first layout == CLS token per batch element.
    cls = z2d.reshape(B, Sp, E)[:, 0, :]                                  # (B, E)

    # MLP head: LayerNorm -> Linear -> GELU, all fused into one kernel.
    y = layernorm_matmul_bias(cls, p["head_ln_g"], p["head_ln_b"],
                              p["head_w"], p["head_b"],
                              activation="gelu", out_dtype=jnp.float32)
    return y


# ----------------------------------------------------------------------------
# Main
# ----------------------------------------------------------------------------
if __name__ == "__main__":
    key = jax.random.PRNGKey(0)
    k_params, k_img = jax.random.split(key)

    # Small but consistent configuration
    patch_size = 4
    input_shape = (4, 16, 16)   # (C, H, W), square images
    embed_dim = 32
    out_dim = 8
    num_transformers = 2
    num_heads = 4
    mlp_dim = 64
    batch = 2

    params = init_params(
        k_params,
        patch_size=patch_size,
        input_shape=input_shape,
        embed_dim=embed_dim,
        out_dim=out_dim,
        num_transformers=num_transformers,
        mlp_dim=mlp_dim,
    )
    pparams = prepare_params(params)   # one-time bf16 cast / layout of all weights
    img = jax.random.normal(k_img, (batch,) + input_shape, jnp.float32)

    fwd = jax.jit(
        functools.partial(
            vision_transformer_forward,
            patch_size=patch_size,
            num_heads=num_heads,
        )
    )
    y = fwd(pparams, img)
    jax.block_until_ready(y)
    assert y.shape == (batch, out_dim), y.shape
    assert y.dtype == jnp.float32
    print("KERNEL_OK")
</pallas_src>

<mosaic_0001>
module attributes {stable_mosaic.version = 11 : i64} {
  func.func @_matmul_bias_kernel(%arg0: i32, %arg1: memref<32x64xf32, #tpu.memory_space<vmem>>, %arg2: memref<64x32xbf16, #tpu.memory_space<vmem>>, %arg3: memref<1x32xf32, #tpu.memory_space<vmem>>, %arg4: memref<32x32xf32, #tpu.memory_space<vmem>>) attributes {dimension_semantics = [#tpu.dimension_semantics<parallel>], iteration_bounds = array<i64: 1>, scalar_prefetch = 0 : i64, scratch_operands = 0 : i64, tpu.core_type = #tpu.core_type<tc>, window_params = [{transform_indices = @transform_0, window_bounds = array<i64: 32, 64>}, {pipeline_mode = #tpu.pipeline_mode<synchronous>, transform_indices = @transform_1, window_bounds = array<i64: 64, 32>}, {pipeline_mode = #tpu.pipeline_mode<synchronous>, transform_indices = @transform_2, window_bounds = array<i64: 1, 32>}, {transform_indices = @transform_3, window_bounds = array<i64: 32, 32>}]} {
    %c0 = arith.constant 0 : index
    %c0_0 = arith.constant 0 : index
    %0 = vector.load %arg1[%c0, %c0_0] : memref<32x64xf32, #tpu.memory_space<vmem>>, vector<32x64xf32>
    %1 = arith.truncf %0 : vector<32x64xf32> to vector<32x64xbf16>
    %c0_1 = arith.constant 0 : index
    %c0_2 = arith.constant 0 : index
    %2 = vector.load %arg2[%c0_1, %c0_2] : memref<64x32xbf16, #tpu.memory_space<vmem>>, vector<64x32xbf16>
    %cst = arith.constant dense<0.000000e+00> : vector<32x32xf32>
    %3 = tpu.matmul %1, %2, %cst {dimension_numbers = #tpu.dot_dimension_numbers<[1], [0], [0], [1], [0, 0, 1, 1], [], []>} : vector<32x64xbf16>, vector<64x32xbf16>, vector<32x32xf32> -> vector<32x32xf32>
    %c0_3 = arith.constant 0 : index
    %c0_4 = arith.constant 0 : index
    %4 = vector.load %arg3[%c0_3, %c0_4] : memref<1x32xf32, #tpu.memory_space<vmem>>, vector<1x32xf32>
    %5 = vector.broadcast %4 : vector<1x32xf32> to vector<32x32xf32>
    %6 = arith.addf %3, %5 : vector<32x32xf32>
    %c0_5 = arith.constant 0 : index
    %c0_6 = arith.constant 0 : index
    %7 = vector.load %arg4[%c0_5, %c0_6] : memref<32x32xf32, #tpu.memory_space<vmem>>, vector<32x32xf32>
    tpu.vector_store %arg4[%c0_5, %c0_6], %6 {strides = array<i32>} : memref<32x32xf32, #tpu.memory_space<vmem>>, vector<32x32xf32>,
    return
  }
  func.func @transform_0(%arg0: i32) -> (i32, i32) {
    %c0_i32 = arith.constant 0 : i32
    %c0_i32_0 = arith.constant 0 : i32
    return %arg0, %c0_i32 : i32, i32
  }
  func.func @transform_1(%arg0: i32) -> (i32, i32) {
    %c0_i32 = arith.constant 0 : i32
    %c0_i32_0 = arith.constant 0 : i32
    %c0_i32_1 = arith.constant 0 : i32
    return %c0_i32, %c0_i32_0 : i32, i32
  }
  func.func @transform_2(%arg0: i32) -> (i32, i32) {
    %c0_i32 = arith.constant 0 : i32
    %c0_i32_0 = arith.constant 0 : i32
    %c0_i32_1 = arith.constant 0 : i32
    return %c0_i32, %c0_i32_0 : i32, i32
  }
  func.func @transform_3(%arg0: i32) -> (i32, i32) {
    %c0_i32 = arith.constant 0 : i32
    %c0_i32_0 = arith.constant 0 : i32
    return %arg0, %c0_i32 : i32, i32
  }
}

module attributes {stable_mosaic.version = 11 : i64} {
  func.func @_matmul_bias_kernel(%arg0: i32, %arg1: memref<48x32xbf16, #tpu.memory_space<vmem>>, %arg2: memref<32x96xbf16, #tpu.memory_space<vmem>>, %arg3: memref<1x96xf32, #tpu.memory_space<vmem>>, %arg4: memref<48x96xbf16, #tpu.memory_space<vmem>>) attributes {dimension_semantics = [#tpu.dimension_semantics<parallel>], iteration_bounds = array<i64: 1>, scalar_prefetch = 0 : i64, scratch_operands = 0 : i64, tpu.core_type = #tpu.core_type<tc>, window_params = [{transform_indices = @transform_0, window_bounds = array<i64: 48, 32>}, {pipeline_mode = #tpu.pipeline_mode<synchronous>, transform_indices = @transform_1, window_bounds = array<i64: 32, 96>}, {pipeline_mode = #tpu.pipeline_mode<synchronous>, transform_indices = @transform_2, window_bounds = array<i64: 1, 96>}, {transform_indices = @transform_3, window_bounds = array<i64: 48, 96>}]} {
    %c0 = arith.constant 0 : index
    %c0_0 = arith.constant 0 : index
    %0 = vector.load %arg1[%c0, %c0_0] : memref<48x32xbf16, #tpu.memory_space<vmem>>, vector<48x32xbf16>
    %c0_1 = arith.constant 0 : index
    %c0_2 = arith.constant 0 : index
    %1 = vector.load %arg2[%c0_1, %c0_2] : memref<32x96xbf16, #tpu.memory_space<vmem>>, vector<32x96xbf16>
    %cst = arith.constant dense<0.000000e+00> : vector<48x96xf32>
    %2 = tpu.matmul %0, %1, %cst {dimension_numbers = #tpu.dot_dimension_numbers<[1], [0], [0], [1], [0, 0, 1, 1], [], []>} : vector<48x32xbf16>, vector<32x96xbf16>, vector<48x96xf32> -> vector<48x96xf32>
    %c0_3 = arith.constant 0 : index
    %c0_4 = arith.constant 0 : index
    %3 = vector.load %arg3[%c0_3, %c0_4] : memref<1x96xf32, #tpu.memory_space<vmem>>, vector<1x96xf32>
    %4 = vector.broadcast %3 : vector<1x96xf32> to vector<48x96xf32>
    %5 = arith.addf %2, %4 : vector<48x96xf32>
    %6 = arith.truncf %5 : vector<48x96xf32> to vector<48x96xbf16>
    %c0_5 = arith.constant 0 : index
    %c0_6 = arith.constant 0 : index
    %7 = vector.load %arg4[%c0_5, %c0_6] : memref<48x96xbf16, #tpu.memory_space<vmem>>, vector<48x96xbf16>
    tpu.vector_store %arg4[%c0_5, %c0_6], %6 {strides = array<i32>} : memref<48x96xbf16, #tpu.memory_space<vmem>>, vector<48x96xbf16>,
    return
  }
  func.func @transform_0(%arg0: i32) -> (i32, i32) {
    %c0_i32 = arith.constant 0 : i32
    %c0_i32_0 = arith.constant 0 : i32
    return %arg0, %c0_i32 : i32, i32
  }
  func.func @transform_1(%arg0: i32) -> (i32, i32) {
    %c0_i32 = arith.constant 0 : i32
    %c0_i32_0 = arith.constant 0 : i32
    %c0_i32_1 = arith.constant 0 : i32
    return %c0_i32, %c0_i32_0 : i32, i32
  }
  func.func @transform_2(%arg0: i32) -> (i32, i32) {
    %c0_i32 = arith.constant 0 : i32
    %c0_i32_0 = arith.constant 0 : i32
    %c0_i32_1 = arith.constant 0 : i32
    return %c0_i32, %c0_i32_0 : i32, i32
  }
  func.func @transform_3(%arg0: i32) -> (i32, i32) {
    %c0_i32 = arith.constant 0 : i32
    %c0_i32_0 = arith.constant 0 : i32
    return %arg0, %c0_i32 : i32, i32
  }
}

module attributes {stable_mosaic.version = 11 : i64} {
  func.func @_attn_kernel(%arg0: i32, %arg1: i32, %arg2: i32, %arg3: memref<1x1x24x8xbf16, #tpu.memory_space<vmem>>, %arg4: memref<1x1x24x8xbf16, #tpu.memory_space<vmem>>, %arg5: memref<1x1x24x8xbf16, #tpu.memory_space<vmem>>, %arg6: memref<1x1x24x8xbf16, #tpu.memory_space<vmem>>) attributes {dimension_semantics = [#tpu.dimension_semantics<parallel>, #tpu.dimension_semantics<parallel>, #tpu.dimension_semantics<parallel>], iteration_bounds = array<i64: 2, 4, 1>, scalar_prefetch = 0 : i64, scratch_operands = 0 : i64, tpu.core_type = #tpu.core_type<tc>, window_params = [{transform_indices = @transform_0, window_bounds = array<i64: 1, 1, 24, 8>}, {transform_indices = @transform_1, window_bounds = array<i64: 1, 1, 24, 8>}, {transform_indices = @transform_2, window_bounds = array<i64: 1, 1, 24, 8>}, {transform_indices = @transform_3, window_bounds = array<i64: 1, 1, 24, 8>}]} {
    %c0 = arith.constant 0 : index
    %c0_0 = arith.constant 0 : index
    %c0_1 = arith.constant 0 : index
    %c0_2 = arith.constant 0 : index
    %0 = vector.load %arg3[%c0, %c0_0, %c0_1, %c0_2] : memref<1x1x24x8xbf16, #tpu.memory_space<vmem>>, vector<1x1x24x8xbf16>
    %1 = vector.shape_cast %0 : vector<1x1x24x8xbf16> to vector<24x8xbf16>
    %2 = arith.extf %1 : vector<24x8xbf16> to vector<24x8xf32>
    %cst = arith.constant 0.353553385 : f32
    %3 = vector.broadcast %cst : f32 to vector<24x8xf32>
    %4 = arith.mulf %2, %3 : vector<24x8xf32>
    %5 = arith.truncf %4 : vector<24x8xf32> to vector<24x8xbf16>
    %c0_3 = arith.constant 0 : index
    %c0_4 = arith.constant 0 : index
    %c0_5 = arith.constant 0 : index
    %c0_6 = arith.constant 0 : index
    %6 = vector.load %arg4[%c0_3, %c0_4, %c0_5, %c0_6] : memref<1x1x24x8xbf16, #tpu.memory_space<vmem>>, vector<1x1x24x8xbf16>
    %7 = vector.shape_cast %6 : vector<1x1x24x8xbf16> to vector<24x8xbf16>
    %c0_7 = arith.constant 0 : index
    %c0_8 = arith.constant 0 : index
    %c0_9 = arith.constant 0 : index
    %c0_10 = arith.constant 0 : index
    %8 = vector.load %arg5[%c0_7, %c0_8, %c0_9, %c0_10] : memref<1x1x24x8xbf16, #tpu.memory_space<vmem>>, vector<1x1x24x8xbf16>
    %9 = vector.shape_cast %8 : vector<1x1x24x8xbf16> to vector<24x8xbf16>
    %cst_11 = arith.constant dense<0.000000e+00> : vector<24x24xf32>
    %10 = tpu.matmul %5, %7, %cst_11 {dimension_numbers = #tpu.dot_dimension_numbers<[1], [1], [0], [0], [0, 0, 1, 0], [], []>} : vector<24x8xbf16>, vector<24x8xbf16>, vector<24x24xf32> -> vector<24x24xf32>
    %11 = tpu.iota {dimensions = array<i32: 1>} : vector<24x24xi32>
    %c17_i32 = arith.constant 17 : i32
    %12 = vector.broadcast %c17_i32 : i32 to vector<24x24xi32>
    %13 = arith.cmpi slt, %11, %12 : vector<24x24xi32>
    %cst_12 = arith.constant -1.000000e+30 : f32
    %14 = vector.broadcast %cst_12 : f32 to vector<24x24xf32>
    %15 = arith.select %13, %10, %14 : vector<24x24xi1>, vector<24x24xf32>
    %cst_13 = arith.constant dense<0xFF800000> : vector<24xf32>
    %16 = vector.multi_reduction <maximumf>, %15, %cst_13 [1] : vector<24x24xf32> to vector<24xf32>
    %17 = vector.shape_cast %16 : vector<24xf32> to vector<24x1xf32>
    %18 = vector.broadcast %17 : vector<24x1xf32> to vector<24x24xf32>
    %19 = arith.subf %15, %18 : vector<24x24xf32>
    %20 = math.exp %19 : vector<24x24xf32>
    %cst_14 = arith.constant dense<0.000000e+00> : vector<24xf32>
    %21 = vector.multi_reduction <add>, %20, %cst_14 [1] : vector<24x24xf32> to vector<24xf32>
    %22 = vector.shape_cast %21 : vector<24xf32> to vector<24x1xf32>
    %23 = arith.truncf %20 : vector<24x24xf32> to vector<24x24xbf16>
    %cst_15 = arith.constant dense<0.000000e+00> : vector<24x8xf32>
    %24 = tpu.matmul %23, %9, %cst_15 {dimension_numbers = #tpu.dot_dimension_numbers<[1], [0], [0], [1], [0, 0, 1, 1], [], []>} : vector<24x24xbf16>, vector<24x8xbf16>, vector<24x8xf32> -> vector<24x8xf32>
    %25 = tpu.reciprocal %22 {approx = true} : vector<24x1xf32> -> vector<24x1xf32>
    %26 = vector.broadcast %25 : vector<24x1xf32> to vector<24x8xf32>
    %27 = arith.mulf %24, %26 : vector<24x8xf32>
    %28 = arith.truncf %27 : vector<24x8xf32> to vector<24x8xbf16>
    %c0_16 = arith.constant 0 : index
    %c0_17 = arith.constant 0 : index
    %c0_18 = arith.constant 0 : index
    %c0_19 = arith.constant 0 : index
    %29 = vector.load %arg6[%c0_16, %c0_17, %c0_18, %c0_19] : memref<1x1x24x8xbf16, #tpu.memory_space<vmem>>, vector<1x1x24x8xbf16>
    %30 = vector.shape_cast %29 : vector<1x1x24x8xbf16> to vector<24x8xbf16>
    %31 = vector.shape_cast %28 : vector<24x8xbf16> to vector<1x1x24x8xbf16>
    tpu.vector_store %arg6[%c0_16, %c0_17, %c0_18, %c0_19], %31 {strides = array<i32>} : memref<1x1x24x8xbf16, #tpu.memory_space<vmem>>, vector<1x1x24x8xbf16>,
    return
  }
  func.func @transform_0(%arg0: i32, %arg1: i32, %arg2: i32) -> (i32, i32, i32, i32) {
    %c0_i32 = arith.constant 0 : i32
    %c0_i32_0 = arith.constant 0 : i32
    return %arg0, %arg1, %arg2, %c0_i32 : i32, i32, i32, i32
  }
  func.func @transform_1(%arg0: i32, %arg1: i32, %arg2: i32) -> (i32, i32, i32, i32) {
    %c0_i32 = arith.constant 0 : i32
    %c0_i32_0 = arith.constant 0 : i32
    %c0_i32_1 = arith.constant 0 : i32
    return %arg0, %arg1, %c0_i32, %c0_i32_0 : i32, i32, i32, i32
  }
  func.func @transform_2(%arg0: i32, %arg1: i32, %arg2: i32) -> (i32, i32, i32, i32) {
    %c0_i32 = arith.constant 0 : i32
    %c0_i32_0 = arith.constant 0 : i32
    %c0_i32_1 = arith.constant 0 : i32
    return %arg0, %arg1, %c0_i32, %c0_i32_0 : i32, i32, i32, i32
  }
  func.func @transform_3(%arg0: i32, %arg1: i32, %arg2: i32) -> (i32, i32, i32, i32) {
    %c0_i32 = arith.constant 0 : i32
    %c0_i32_0 = arith.constant 0 : i32
    return %arg0, %arg1, %arg2, %c0_i32 : i32, i32, i32, i32
  }
}

module attributes {stable_mosaic.version = 11 : i64} {
  func.func @_matmul_res_ln_kernel(%arg0: i32, %arg1: memref<48x32xbf16, #tpu.memory_space<vmem>>, %arg2: memref<32x32xbf16, #tpu.memory_space<vmem>>, %arg3: memref<1x32xf32, #tpu.memory_space<vmem>>, %arg4: memref<48x32xbf16, #tpu.memory_space<vmem>>, %arg5: memref<1x32xf32, #tpu.memory_space<vmem>>, %arg6: memref<1x32xf32, #tpu.memory_space<vmem>>, %arg7: memref<48x32xbf16, #tpu.memory_space<vmem>>) attributes {dimension_semantics = [#tpu.dimension_semantics<parallel>], iteration_bounds = array<i64: 1>, scalar_prefetch = 0 : i64, scratch_operands = 0 : i64, tpu.core_type = #tpu.core_type<tc>, window_params = [{transform_indices = @transform_0, window_bounds = array<i64: 48, 32>}, {pipeline_mode = #tpu.pipeline_mode<synchronous>, transform_indices = @transform_1, window_bounds = array<i64: 32, 32>}, {pipeline_mode = #tpu.pipeline_mode<synchronous>, transform_indices = @transform_2, window_bounds = array<i64: 1, 32>}, {transform_indices = @transform_3, window_bounds = array<i64: 48, 32>}, {pipeline_mode = #tpu.pipeline_mode<synchronous>, transform_indices = @transform_4, window_bounds = array<i64: 1, 32>}, {pipeline_mode = #tpu.pipeline_mode<synchronous>, transform_indices = @transform_5, window_bounds = array<i64: 1, 32>}, {transform_indices = @transform_6, window_bounds = array<i64: 48, 32>}]} {
    %c0 = arith.constant 0 : index
    %c0_0 = arith.constant 0 : index
    %0 = vector.load %arg1[%c0, %c0_0] : memref<48x32xbf16, #tpu.memory_space<vmem>>, vector<48x32xbf16>
    %c0_1 = arith.constant 0 : index
    %c0_2 = arith.constant 0 : index
    %1 = vector.load %arg2[%c0_1, %c0_2] : memref<32x32xbf16, #tpu.memory_space<vmem>>, vector<32x32xbf16>
    %cst = arith.constant dense<0.000000e+00> : vector<48x32xf32>
    %2 = tpu.matmul %0, %1, %cst {dimension_numbers = #tpu.dot_dimension_numbers<[1], [0], [0], [1], [0, 0, 1, 1], [], []>} : vector<48x32xbf16>, vector<32x32xbf16>, vector<48x32xf32> -> vector<48x32xf32>
    %c0_3 = arith.constant 0 : index
    %c0_4 = arith.constant 0 : index
    %3 = vector.load %arg3[%c0_3, %c0_4] : memref<1x32xf32, #tpu.memory_space<vmem>>, vector<1x32xf32>
    %4 = vector.broadcast %3 : vector<1x32xf32> to vector<48x32xf32>
    %5 = arith.addf %2, %4 : vector<48x32xf32>
    %c0_5 = arith.constant 0 : index
    %c0_6 = arith.constant 0 : index
    %6 = vector.load %arg4[%c0_5, %c0_6] : memref<48x32xbf16, #tpu.memory_space<vmem>>, vector<48x32xbf16>
    %7 = arith.extf %6 : vector<48x32xbf16> to vector<48x32xf32>
    %8 = arith.addf %5, %7 : vector<48x32xf32>
    %cst_7 = arith.constant dense<0.000000e+00> : vector<48xf32>
    %9 = vector.multi_reduction <add>, %8, %cst_7 [1] : vector<48x32xf32> to vector<48xf32>
    %10 = vector.shape_cast %9 : vector<48xf32> to vector<48x1xf32>
    %cst_8 = arith.constant 3.200000e+01 : f32
    %11 = vector.broadcast %cst_8 : f32 to vector<48x1xf32>
    %12 = arith.divf %10, %11 : vector<48x1xf32>
    %13 = vector.broadcast %12 : vector<48x1xf32> to vector<48x32xf32>
    %14 = arith.subf %8, %13 : vector<48x32xf32>
    %15 = arith.mulf %14, %14 : vector<48x32xf32>
    %cst_9 = arith.constant dense<0.000000e+00> : vector<48xf32>
    %16 = vector.multi_reduction <add>, %15, %cst_9 [1] : vector<48x32xf32> to vector<48xf32>
    %17 = vector.shape_cast %16 : vector<48xf32> to vector<48x1xf32>
    %cst_10 = arith.constant 3.200000e+01 : f32
    %18 = vector.broadcast %cst_10 : f32 to vector<48x1xf32>
    %19 = arith.divf %17, %18 : vector<48x1xf32>
    %cst_11 = arith.constant 9.99999974E-6 : f32
    %20 = vector.broadcast %cst_11 : f32 to vector<48x1xf32>
    %21 = arith.addf %19, %20 : vector<48x1xf32>
    %22 = math.rsqrt %21 : vector<48x1xf32>
    %23 = vector.broadcast %22 : vector<48x1xf32> to vector<48x32xf32>
    %24 = arith.mulf %14, %23 : vector<48x32xf32>
    %c0_12 = arith.constant 0 : index
    %c0_13 = arith.constant 0 : index
    %25 = vector.load %arg5[%c0_12, %c0_13] : memref<1x32xf32, #tpu.memory_space<vmem>>, vector<1x32xf32>
    %26 = vector.broadcast %25 : vector<1x32xf32> to vector<48x32xf32>
    %27 = arith.mulf %24, %26 : vector<48x32xf32>
    %c0_14 = arith.constant 0 : index
    %c0_15 = arith.constant 0 : index
    %28 = vector.load %arg6[%c0_14, %c0_15] : memref<1x32xf32, #tpu.memory_space<vmem>>, vector<1x32xf32>
    %29 = vector.broadcast %28 : vector<1x32xf32> to vector<48x32xf32>
    %30 = arith.addf %27, %29 : vector<48x32xf32>
    %31 = arith.truncf %30 : vector<48x32xf32> to vector<48x32xbf16>
    %c0_16 = arith.constant 0 : index
    %c0_17 = arith.constant 0 : index
    %32 = vector.load %arg7[%c0_16, %c0_17] : memref<48x32xbf16, #tpu.memory_space<vmem>>, vector<48x32xbf16>
    tpu.vector_store %arg7[%c0_16, %c0_17], %31 {strides = array<i32>} : memref<48x32xbf16, #tpu.memory_space<vmem>>, vector<48x32xbf16>,
    return
  }
  func.func @transform_0(%arg0: i32) -> (i32, i32) {
    %c0_i32 = arith.constant 0 : i32
    %c0_i32_0 = arith.constant 0 : i32
    return %arg0, %c0_i32 : i32, i32
  }
  func.func @transform_1(%arg0: i32) -> (i32, i32) {
    %c0_i32 = arith.constant 0 : i32
    %c0_i32_0 = arith.constant 0 : i32
    %c0_i32_1 = arith.constant 0 : i32
    return %c0_i32, %c0_i32_0 : i32, i32
  }
  func.func @transform_2(%arg0: i32) -> (i32, i32) {
    %c0_i32 = arith.constant 0 : i32
    %c0_i32_0 = arith.constant 0 : i32
    %c0_i32_1 = arith.constant 0 : i32
    return %c0_i32, %c0_i32_0 : i32, i32
  }
  func.func @transform_3(%arg0: i32) -> (i32, i32) {
    %c0_i32 = arith.constant 0 : i32
    %c0_i32_0 = arith.constant 0 : i32
    return %arg0, %c0_i32 : i32, i32
  }
  func.func @transform_4(%arg0: i32) -> (i32, i32) {
    %c0_i32 = arith.constant 0 : i32
    %c0_i32_0 = arith.constant 0 : i32
    %c0_i32_1 = arith.constant 0 : i32
    return %c0_i32, %c0_i32_0 : i32, i32
  }
  func.func @transform_5(%arg0: i32) -> (i32, i32) {
    %c0_i32 = arith.constant 0 : i32
    %c0_i32_0 = arith.constant 0 : i32
    %c0_i32_1 = arith.constant 0 : i32
    return %c0_i32, %c0_i32_0 : i32, i32
  }
  func.func @transform_6(%arg0: i32) -> (i32, i32) {
    %c0_i32 = arith.constant 0 : i32
    %c0_i32_0 = arith.constant 0 : i32
    return %arg0, %c0_i32 : i32, i32
  }
}

module attributes {stable_mosaic.version = 11 : i64} {
  func.func @_matmul_bias_kernel(%arg0: i32, %arg1: memref<48x32xbf16, #tpu.memory_space<vmem>>, %arg2: memref<32x64xbf16, #tpu.memory_space<vmem>>, %arg3: memref<1x64xf32, #tpu.memory_space<vmem>>, %arg4: memref<48x64xbf16, #tpu.memory_space<vmem>>) attributes {dimension_semantics = [#tpu.dimension_semantics<parallel>], iteration_bounds = array<i64: 1>, scalar_prefetch = 0 : i64, scratch_operands = 0 : i64, tpu.core_type = #tpu.core_type<tc>, window_params = [{transform_indices = @transform_0, window_bounds = array<i64: 48, 32>}, {pipeline_mode = #tpu.pipeline_mode<synchronous>, transform_indices = @transform_1, window_bounds = array<i64: 32, 64>}, {pipeline_mode = #tpu.pipeline_mode<synchronous>, transform_indices = @transform_2, window_bounds = array<i64: 1, 64>}, {transform_indices = @transform_3, window_bounds = array<i64: 48, 64>}]} {
    %c0 = arith.constant 0 : index
    %c0_0 = arith.constant 0 : index
    %0 = vector.load %arg1[%c0, %c0_0] : memref<48x32xbf16, #tpu.memory_space<vmem>>, vector<48x32xbf16>
    %c0_1 = arith.constant 0 : index
    %c0_2 = arith.constant 0 : index
    %1 = vector.load %arg2[%c0_1, %c0_2] : memref<32x64xbf16, #tpu.memory_space<vmem>>, vector<32x64xbf16>
    %cst = arith.constant dense<0.000000e+00> : vector<48x64xf32>
    %2 = tpu.matmul %0, %1, %cst {dimension_numbers = #tpu.dot_dimension_numbers<[1], [0], [0], [1], [0, 0, 1, 1], [], []>} : vector<48x32xbf16>, vector<32x64xbf16>, vector<48x64xf32> -> vector<48x64xf32>
    %c0_3 = arith.constant 0 : index
    %c0_4 = arith.constant 0 : index
    %3 = vector.load %arg3[%c0_3, %c0_4] : memref<1x64xf32, #tpu.memory_space<vmem>>, vector<1x64xf32>
    %4 = vector.broadcast %3 : vector<1x64xf32> to vector<48x64xf32>
    %5 = arith.addf %2, %4 : vector<48x64xf32>
    %cst_5 = arith.constant 5.000000e-01 : f32
    %6 = vector.broadcast %cst_5 : f32 to vector<48x64xf32>
    %7 = arith.mulf %6, %5 : vector<48x64xf32>
    %cst_6 = arith.constant 0.707106769 : f32
    %8 = vector.broadcast %cst_6 : f32 to vector<48x64xf32>
    %9 = arith.mulf %5, %8 : vector<48x64xf32>
    %10 = math.absf %9 : vector<48x64xf32>
    %cst_7 = arith.constant 0.327591091 : f32
    %11 = vector.broadcast %cst_7 : f32 to vector<48x64xf32>
    %12 = arith.mulf %11, %10 : vector<48x64xf32>
    %cst_8 = arith.constant 1.000000e+00 : f32
    %13 = vector.broadcast %cst_8 : f32 to vector<48x64xf32>
    %14 = arith.addf %13, %12 : vector<48x64xf32>
    %cst_9 = arith.constant 1.000000e+00 : f32
    %15 = vector.broadcast %cst_9 : f32 to vector<48x64xf32>
    %16 = arith.divf %15, %14 : vector<48x64xf32>
    %cst_10 = arith.constant 1.06140542 : f32
    %17 = vector.broadcast %cst_10 : f32 to vector<48x64xf32>
    %18 = arith.mulf %16, %17 : vector<48x64xf32>
    %cst_11 = arith.constant -1.45315206 : f32
    %19 = vector.broadcast %cst_11 : f32 to vector<48x64xf32>
    %20 = arith.addf %19, %18 : vector<48x64xf32>
    %21 = arith.mulf %16, %20 : vector<48x64xf32>
    %cst_12 = arith.constant 1.42141378 : f32
    %22 = vector.broadcast %cst_12 : f32 to vector<48x64xf32>
    %23 = arith.addf %22, %21 : vector<48x64xf32>
    %24 = arith.mulf %16, %23 : vector<48x64xf32>
    %cst_13 = arith.constant -0.284496725 : f32
    %25 = vector.broadcast %cst_13 : f32 to vector<48x64xf32>
    %26 = arith.addf %25, %24 : vector<48x64xf32>
    %27 = arith.mulf %16, %26 : vector<48x64xf32>
    %cst_14 = arith.constant 0.254829586 : f32
    %28 = vector.broadcast %cst_14 : f32 to vector<48x64xf32>
    %29 = arith.addf %28, %27 : vector<48x64xf32>
    %30 = arith.mulf %16, %29 : vector<48x64xf32>
    %cst_15 = arith.constant 0.000000e+00 : f32
    %31 = vector.broadcast %cst_15 : f32 to vector<48x64xf32>
    %32 = arith.subf %31, %10 : vector<48x64xf32>
    %33 = arith.mulf %32, %10 : vector<48x64xf32>
    %34 = math.exp %33 : vector<48x64xf32>
    %35 = arith.mulf %30, %34 : vector<48x64xf32>
    %cst_16 = arith.constant 1.000000e+00 : f32
    %36 = vector.broadcast %cst_16 : f32 to vector<48x64xf32>
    %37 = arith.subf %36, %35 : vector<48x64xf32>
    %cst_17 = arith.constant 0.000000e+00 : f32
    %38 = vector.broadcast %cst_17 : f32 to vector<48x64xf32>
    %39 = arith.cmpf oge, %9, %38 : vector<48x64xf32>
    %cst_18 = arith.constant 0.000000e+00 : f32
    %40 = vector.broadcast %cst_18 : f32 to vector<48x64xf32>
    %41 = arith.subf %40, %37 : vector<48x64xf32>
    %42 = arith.select %39, %37, %41 : vector<48x64xi1>, vector<48x64xf32>
    %cst_19 = arith.constant 1.000000e+00 : f32
    %43 = vector.broadcast %cst_19 : f32 to vector<48x64xf32>
    %44 = arith.addf %43, %42 : vector<48x64xf32>
    %45 = arith.mulf %7, %44 : vector<48x64xf32>
    %46 = arith.truncf %45 : vector<48x64xf32> to vector<48x64xbf16>
    %c0_20 = arith.constant 0 : index
    %c0_21 = arith.constant 0 : index
    %47 = vector.load %arg4[%c0_20, %c0_21] : memref<48x64xbf16, #tpu.memory_space<vmem>>, vector<48x64xbf16>
    tpu.vector_store %arg4[%c0_20, %c0_21], %46 {strides = array<i32>} : memref<48x64xbf16, #tpu.memory_space<vmem>>, vector<48x64xbf16>,
    return
  }
  func.func @transform_0(%arg0: i32) -> (i32, i32) {
    %c0_i32 = arith.constant 0 : i32
    %c0_i32_0 = arith.constant 0 : i32
    return %arg0, %c0_i32 : i32, i32
  }
  func.func @transform_1(%arg0: i32) -> (i32, i32) {
    %c0_i32 = arith.constant 0 : i32
    %c0_i32_0 = arith.constant 0 : i32
    %c0_i32_1 = arith.constant 0 : i32
    return %c0_i32, %c0_i32_0 : i32, i32
  }
  func.func @transform_2(%arg0: i32) -> (i32, i32) {
    %c0_i32 = arith.constant 0 : i32
    %c0_i32_0 = arith.constant 0 : i32
    %c0_i32_1 = arith.constant 0 : i32
    return %c0_i32, %c0_i32_0 : i32, i32
  }
  func.func @transform_3(%arg0: i32) -> (i32, i32) {
    %c0_i32 = arith.constant 0 : i32
    %c0_i32_0 = arith.constant 0 : i32
    return %arg0, %c0_i32 : i32, i32
  }
}

module attributes {stable_mosaic.version = 11 : i64} {
  func.func @_matmul_res_ln_kernel(%arg0: i32, %arg1: memref<48x64xbf16, #tpu.memory_space<vmem>>, %arg2: memref<64x32xbf16, #tpu.memory_space<vmem>>, %arg3: memref<1x32xf32, #tpu.memory_space<vmem>>, %arg4: memref<48x32xbf16, #tpu.memory_space<vmem>>, %arg5: memref<1x32xf32, #tpu.memory_space<vmem>>, %arg6: memref<1x32xf32, #tpu.memory_space<vmem>>, %arg7: memref<48x32xbf16, #tpu.memory_space<vmem>>) attributes {dimension_semantics = [#tpu.dimension_semantics<parallel>], iteration_bounds = array<i64: 1>, scalar_prefetch = 0 : i64, scratch_operands = 0 : i64, tpu.core_type = #tpu.core_type<tc>, window_params = [{transform_indices = @transform_0, window_bounds = array<i64: 48, 64>}, {pipeline_mode = #tpu.pipeline_mode<synchronous>, transform_indices = @transform_1, window_bounds = array<i64: 64, 32>}, {pipeline_mode = #tpu.pipeline_mode<synchronous>, transform_indices = @transform_2, window_bounds = array<i64: 1, 32>}, {transform_indices = @transform_3, window_bounds = array<i64: 48, 32>}, {pipeline_mode = #tpu.pipeline_mode<synchronous>, transform_indices = @transform_4, window_bounds = array<i64: 1, 32>}, {pipeline_mode = #tpu.pipeline_mode<synchronous>, transform_indices = @transform_5, window_bounds = array<i64: 1, 32>}, {transform_indices = @transform_6, window_bounds = array<i64: 48, 32>}]} {
    %c0 = arith.constant 0 : index
    %c0_0 = arith.constant 0 : index
    %0 = vector.load %arg1[%c0, %c0_0] : memref<48x64xbf16, #tpu.memory_space<vmem>>, vector<48x64xbf16>
    %c0_1 = arith.constant 0 : index
    %c0_2 = arith.constant 0 : index
    %1 = vector.load %arg2[%c0_1, %c0_2] : memref<64x32xbf16, #tpu.memory_space<vmem>>, vector<64x32xbf16>
    %cst = arith.constant dense<0.000000e+00> : vector<48x32xf32>
    %2 = tpu.matmul %0, %1, %cst {dimension_numbers = #tpu.dot_dimension_numbers<[1], [0], [0], [1], [0, 0, 1, 1], [], []>} : vector<48x64xbf16>, vector<64x32xbf16>, vector<48x32xf32> -> vector<48x32xf32>
    %c0_3 = arith.constant 0 : index
    %c0_4 = arith.constant 0 : index
    %3 = vector.load %arg3[%c0_3, %c0_4] : memref<1x32xf32, #tpu.memory_space<vmem>>, vector<1x32xf32>
    %4 = vector.broadcast %3 : vector<1x32xf32> to vector<48x32xf32>
    %5 = arith.addf %2, %4 : vector<48x32xf32>
    %c0_5 = arith.constant 0 : index
    %c0_6 = arith.constant 0 : index
    %6 = vector.load %arg4[%c0_5, %c0_6] : memref<48x32xbf16, #tpu.memory_space<vmem>>, vector<48x32xbf16>
    %7 = arith.extf %6 : vector<48x32xbf16> to vector<48x32xf32>
    %8 = arith.addf %5, %7 : vector<48x32xf32>
    %cst_7 = arith.constant dense<0.000000e+00> : vector<48xf32>
    %9 = vector.multi_reduction <add>, %8, %cst_7 [1] : vector<48x32xf32> to vector<48xf32>
    %10 = vector.shape_cast %9 : vector<48xf32> to vector<48x1xf32>
    %cst_8 = arith.constant 3.200000e+01 : f32
    %11 = vector.broadcast %cst_8 : f32 to vector<48x1xf32>
    %12 = arith.divf %10, %11 : vector<48x1xf32>
    %13 = vector.broadcast %12 : vector<48x1xf32> to vector<48x32xf32>
    %14 = arith.subf %8, %13 : vector<48x32xf32>
    %15 = arith.mulf %14, %14 : vector<48x32xf32>
    %cst_9 = arith.constant dense<0.000000e+00> : vector<48xf32>
    %16 = vector.multi_reduction <add>, %15, %cst_9 [1] : vector<48x32xf32> to vector<48xf32>
    %17 = vector.shape_cast %16 : vector<48xf32> to vector<48x1xf32>
    %cst_10 = arith.constant 3.200000e+01 : f32
    %18 = vector.broadcast %cst_10 : f32 to vector<48x1xf32>
    %19 = arith.divf %17, %18 : vector<48x1xf32>
    %cst_11 = arith.constant 9.99999974E-6 : f32
    %20 = vector.broadcast %cst_11 : f32 to vector<48x1xf32>
    %21 = arith.addf %19, %20 : vector<48x1xf32>
    %22 = math.rsqrt %21 : vector<48x1xf32>
    %23 = vector.broadcast %22 : vector<48x1xf32> to vector<48x32xf32>
    %24 = arith.mulf %14, %23 : vector<48x32xf32>
    %c0_12 = arith.constant 0 : index
    %c0_13 = arith.constant 0 : index
    %25 = vector.load %arg5[%c0_12, %c0_13] : memref<1x32xf32, #tpu.memory_space<vmem>>, vector<1x32xf32>
    %26 = vector.broadcast %25 : vector<1x32xf32> to vector<48x32xf32>
    %27 = arith.mulf %24, %26 : vector<48x32xf32>
    %c0_14 = arith.constant 0 : index
    %c0_15 = arith.constant 0 : index
    %28 = vector.load %arg6[%c0_14, %c0_15] : memref<1x32xf32, #tpu.memory_space<vmem>>, vector<1x32xf32>
    %29 = vector.broadcast %28 : vector<1x32xf32> to vector<48x32xf32>
    %30 = arith.addf %27, %29 : vector<48x32xf32>
    %31 = arith.truncf %30 : vector<48x32xf32> to vector<48x32xbf16>
    %c0_16 = arith.constant 0 : index
    %c0_17 = arith.constant 0 : index
    %32 = vector.load %arg7[%c0_16, %c0_17] : memref<48x32xbf16, #tpu.memory_space<vmem>>, vector<48x32xbf16>
    tpu.vector_store %arg7[%c0_16, %c0_17], %31 {strides = array<i32>} : memref<48x32xbf16, #tpu.memory_space<vmem>>, vector<48x32xbf16>,
    return
  }
  func.func @transform_0(%arg0: i32) -> (i32, i32) {
    %c0_i32 = arith.constant 0 : i32
    %c0_i32_0 = arith.constant 0 : i32
    return %arg0, %c0_i32 : i32, i32
  }
  func.func @transform_1(%arg0: i32) -> (i32, i32) {
    %c0_i32 = arith.constant 0 : i32
    %c0_i32_0 = arith.constant 0 : i32
    %c0_i32_1 = arith.constant 0 : i32
    return %c0_i32, %c0_i32_0 : i32, i32
  }
  func.func @transform_2(%arg0: i32) -> (i32, i32) {
    %c0_i32 = arith.constant 0 : i32
    %c0_i32_0 = arith.constant 0 : i32
    %c0_i32_1 = arith.constant 0 : i32
    return %c0_i32, %c0_i32_0 : i32, i32
  }
  func.func @transform_3(%arg0: i32) -> (i32, i32) {
    %c0_i32 = arith.constant 0 : i32
    %c0_i32_0 = arith.constant 0 : i32
    return %arg0, %c0_i32 : i32, i32
  }
  func.func @transform_4(%arg0: i32) -> (i32, i32) {
    %c0_i32 = arith.constant 0 : i32
    %c0_i32_0 = arith.constant 0 : i32
    %c0_i32_1 = arith.constant 0 : i32
    return %c0_i32, %c0_i32_0 : i32, i32
  }
  func.func @transform_5(%arg0: i32) -> (i32, i32) {
    %c0_i32 = arith.constant 0 : i32
    %c0_i32_0 = arith.constant 0 : i32
    %c0_i32_1 = arith.constant 0 : i32
    return %c0_i32, %c0_i32_0 : i32, i32
  }
  func.func @transform_6(%arg0: i32) -> (i32, i32) {
    %c0_i32 = arith.constant 0 : i32
    %c0_i32_0 = arith.constant 0 : i32
    return %arg0, %c0_i32 : i32, i32
  }
}

module attributes {stable_mosaic.version = 11 : i64} {
  func.func @_ln_matmul_bias_kernel(%arg0: i32, %arg1: memref<2x32xbf16, #tpu.memory_space<vmem>>, %arg2: memref<1x32xf32, #tpu.memory_space<vmem>>, %arg3: memref<1x32xf32, #tpu.memory_space<vmem>>, %arg4: memref<32x8xbf16, #tpu.memory_space<vmem>>, %arg5: memref<1x8xf32, #tpu.memory_space<vmem>>, %arg6: memref<2x8xf32, #tpu.memory_space<vmem>>) attributes {dimension_semantics = [#tpu.dimension_semantics<parallel>], iteration_bounds = array<i64: 1>, scalar_prefetch = 0 : i64, scratch_operands = 0 : i64, tpu.core_type = #tpu.core_type<tc>, window_params = [{transform_indices = @transform_0, window_bounds = array<i64: 2, 32>}, {pipeline_mode = #tpu.pipeline_mode<synchronous>, transform_indices = @transform_1, window_bounds = array<i64: 1, 32>}, {pipeline_mode = #tpu.pipeline_mode<synchronous>, transform_indices = @transform_2, window_bounds = array<i64: 1, 32>}, {pipeline_mode = #tpu.pipeline_mode<synchronous>, transform_indices = @transform_3, window_bounds = array<i64: 32, 8>}, {pipeline_mode = #tpu.pipeline_mode<synchronous>, transform_indices = @transform_4, window_bounds = array<i64: 1, 8>}, {transform_indices = @transform_5, window_bounds = array<i64: 2, 8>}]} {
    %c0 = arith.constant 0 : index
    %c0_0 = arith.constant 0 : index
    %0 = vector.load %arg1[%c0, %c0_0] : memref<2x32xbf16, #tpu.memory_space<vmem>>, vector<2x32xbf16>
    %1 = arith.extf %0 : vector<2x32xbf16> to vector<2x32xf32>
    %cst = arith.constant dense<0.000000e+00> : vector<2xf32>
    %2 = vector.multi_reduction <add>, %1, %cst [1] : vector<2x32xf32> to vector<2xf32>
    %3 = vector.shape_cast %2 : vector<2xf32> to vector<2x1xf32>
    %cst_1 = arith.constant 3.200000e+01 : f32
    %4 = vector.broadcast %cst_1 : f32 to vector<2x1xf32>
    %5 = arith.divf %3, %4 : vector<2x1xf32>
    %6 = vector.broadcast %5 : vector<2x1xf32> to vector<2x32xf32>
    %7 = arith.subf %1, %6 : vector<2x32xf32>
    %8 = arith.mulf %7, %7 : vector<2x32xf32>
    %cst_2 = arith.constant dense<0.000000e+00> : vector<2xf32>
    %9 = vector.multi_reduction <add>, %8, %cst_2 [1] : vector<2x32xf32> to vector<2xf32>
    %10 = vector.shape_cast %9 : vector<2xf32> to vector<2x1xf32>
    %cst_3 = arith.constant 3.200000e+01 : f32
    %11 = vector.broadcast %cst_3 : f32 to vector<2x1xf32>
    %12 = arith.divf %10, %11 : vector<2x1xf32>
    %cst_4 = arith.constant 9.99999974E-6 : f32
    %13 = vector.broadcast %cst_4 : f32 to vector<2x1xf32>
    %14 = arith.addf %12, %13 : vector<2x1xf32>
    %15 = math.rsqrt %14 : vector<2x1xf32>
    %16 = vector.broadcast %15 : vector<2x1xf32> to vector<2x32xf32>
    %17 = arith.mulf %7, %16 : vector<2x32xf32>
    %c0_5 = arith.constant 0 : index
    %c0_6 = arith.constant 0 : index
    %18 = vector.load %arg2[%c0_5, %c0_6] : memref<1x32xf32, #tpu.memory_space<vmem>>, vector<1x32xf32>
    %19 = vector.broadcast %18 : vector<1x32xf32> to vector<2x32xf32>
    %20 = arith.mulf %17, %19 : vector<2x32xf32>
    %c0_7 = arith.constant 0 : index
    %c0_8 = arith.constant 0 : index
    %21 = vector.load %arg3[%c0_7, %c0_8] : memref<1x32xf32, #tpu.memory_space<vmem>>, vector<1x32xf32>
    %22 = vector.broadcast %21 : vector<1x32xf32> to vector<2x32xf32>
    %23 = arith.addf %20, %22 : vector<2x32xf32>
    %24 = arith.truncf %23 : vector<2x32xf32> to vector<2x32xbf16>
    %c0_9 = arith.constant 0 : index
    %c0_10 = arith.constant 0 : index
    %25 = vector.load %arg4[%c0_9, %c0_10] : memref<32x8xbf16, #tpu.memory_space<vmem>>, vector<32x8xbf16>
    %cst_11 = arith.constant dense<0.000000e+00> : vector<2x8xf32>
    %26 = tpu.matmul %24, %25, %cst_11 {dimension_numbers = #tpu.dot_dimension_numbers<[1], [0], [0], [1], [0, 0, 1, 1], [], []>} : vector<2x32xbf16>, vector<32x8xbf16>, vector<2x8xf32> -> vector<2x8xf32>
    %c0_12 = arith.constant 0 : index
    %c0_13 = arith.constant 0 : index
    %27 = vector.load %arg5[%c0_12, %c0_13] : memref<1x8xf32, #tpu.memory_space<vmem>>, vector<1x8xf32>
    %28 = vector.broadcast %27 : vector<1x8xf32> to vector<2x8xf32>
    %29 = arith.addf %26, %28 : vector<2x8xf32>
    %cst_14 = arith.constant 5.000000e-01 : f32
    %30 = vector.broadcast %cst_14 : f32 to vector<2x8xf32>
    %31 = arith.mulf %30, %29 : vector<2x8xf32>
    %cst_15 = arith.constant 0.707106769 : f32
    %32 = vector.broadcast %cst_15 : f32 to vector<2x8xf32>
    %33 = arith.mulf %29, %32 : vector<2x8xf32>
    %34 = math.absf %33 : vector<2x8xf32>
    %cst_16 = arith.constant 0.327591091 : f32
    %35 = vector.broadcast %cst_16 : f32 to vector<2x8xf32>
    %36 = arith.mulf %35, %34 : vector<2x8xf32>
    %cst_17 = arith.constant 1.000000e+00 : f32
    %37 = vector.broadcast %cst_17 : f32 to vector<2x8xf32>
    %38 = arith.addf %37, %36 : vector<2x8xf32>
    %cst_18 = arith.constant 1.000000e+00 : f32
    %39 = vector.broadcast %cst_18 : f32 to vector<2x8xf32>
    %40 = arith.divf %39, %38 : vector<2x8xf32>
    %cst_19 = arith.constant 1.06140542 : f32
    %41 = vector.broadcast %cst_19 : f32 to vector<2x8xf32>
    %42 = arith.mulf %40, %41 : vector<2x8xf32>
    %cst_20 = arith.constant -1.45315206 : f32
    %43 = vector.broadcast %cst_20 : f32 to vector<2x8xf32>
    %44 = arith.addf %43, %42 : vector<2x8xf32>
    %45 = arith.mulf %40, %44 : vector<2x8xf32>
    %cst_21 = arith.constant 1.42141378 : f32
    %46 = vector.broadcast %cst_21 : f32 to vector<2x8xf32>
    %47 = arith.addf %46, %45 : vector<2x8xf32>
    %48 = arith.mulf %40, %47 : vector<2x8xf32>
    %cst_22 = arith.constant -0.284496725 : f32
    %49 = vector.broadcast %cst_22 : f32 to vector<2x8xf32>
    %50 = arith.addf %49, %48 : vector<2x8xf32>
    %51 = arith.mulf %40, %50 : vector<2x8xf32>
    %cst_23 = arith.constant 0.254829586 : f32
    %52 = vector.broadcast %cst_23 : f32 to vector<2x8xf32>
    %53 = arith.addf %52, %51 : vector<2x8xf32>
    %54 = arith.mulf %40, %53 : vector<2x8xf32>
    %cst_24 = arith.constant 0.000000e+00 : f32
    %55 = vector.broadcast %cst_24 : f32 to vector<2x8xf32>
    %56 = arith.subf %55, %34 : vector<2x8xf32>
    %57 = arith.mulf %56, %34 : vector<2x8xf32>
    %58 = math.exp %57 : vector<2x8xf32>
    %59 = arith.mulf %54, %58 : vector<2x8xf32>
    %cst_25 = arith.constant 1.000000e+00 : f32
    %60 = vector.broadcast %cst_25 : f32 to vector<2x8xf32>
    %61 = arith.subf %60, %59 : vector<2x8xf32>
    %cst_26 = arith.constant 0.000000e+00 : f32
    %62 = vector.broadcast %cst_26 : f32 to vector<2x8xf32>
    %63 = arith.cmpf oge, %33, %62 : vector<2x8xf32>
    %cst_27 = arith.constant 0.000000e+00 : f32
    %64 = vector.broadcast %cst_27 : f32 to vector<2x8xf32>
    %65 = arith.subf %64, %61 : vector<2x8xf32>
    %66 = arith.select %63, %61, %65 : vector<2x8xi1>, vector<2x8xf32>
    %cst_28 = arith.constant 1.000000e+00 : f32
    %67 = vector.broadcast %cst_28 : f32 to vector<2x8xf32>
    %68 = arith.addf %67, %66 : vector<2x8xf32>
    %69 = arith.mulf %31, %68 : vector<2x8xf32>
    %c0_29 = arith.constant 0 : index
    %c0_30 = arith.constant 0 : index
    %70 = vector.load %arg6[%c0_29, %c0_30] : memref<2x8xf32, #tpu.memory_space<vmem>>, vector<2x8xf32>
    tpu.vector_store %arg6[%c0_29, %c0_30], %69 {strides = array<i32>} : memref<2x8xf32, #tpu.memory_space<vmem>>, vector<2x8xf32>,
    return
  }
  func.func @transform_0(%arg0: i32) -> (i32, i32) {
    %c0_i32 = arith.constant 0 : i32
    %c0_i32_0 = arith.constant 0 : i32
    return %arg0, %c0_i32 : i32, i32
  }
  func.func @transform_1(%arg0: i32) -> (i32, i32) {
    %c0_i32 = arith.constant 0 : i32
    %c0_i32_0 = arith.constant 0 : i32
    %c0_i32_1 = arith.constant 0 : i32
    return %c0_i32, %c0_i32_0 : i32, i32
  }
  func.func @transform_2(%arg0: i32) -> (i32, i32) {
    %c0_i32 = arith.constant 0 : i32
    %c0_i32_0 = arith.constant 0 : i32
    %c0_i32_1 = arith.constant 0 : i32
    return %c0_i32, %c0_i32_0 : i32, i32
  }
  func.func @transform_3(%arg0: i32) -> (i32, i32) {
    %c0_i32 = arith.constant 0 : i32
    %c0_i32_0 = arith.constant 0 : i32
    %c0_i32_1 = arith.constant 0 : i32
    return %c0_i32, %c0_i32_0 : i32, i32
  }
  func.func @transform_4(%arg0: i32) -> (i32, i32) {
    %c0_i32 = arith.constant 0 : i32
    %c0_i32_0 = arith.constant 0 : i32
    %c0_i32_1 = arith.constant 0 : i32
    return %c0_i32, %c0_i32_0 : i32, i32
  }
  func.func @transform_5(%arg0: i32) -> (i32, i32) {
    %c0_i32 = arith.constant 0 : i32
    %c0_i32_0 = arith.constant 0 : i32
    return %arg0, %c0_i32 : i32, i32
  }
}

</mosaic_0001>

<llo_original>
// kernel: vision_transformer_forward.12
$region0: #{vision_transformer_forward.12}
  #allocation0 [shape = 'u32[]', space=smem, size = 0x4, offset = 0x4, fixed_abs, tag = 'smem constant byte address 0x4 - core index']
  #allocation1 [shape = 'u32[144,128]{1,0:T(1,128)}', space=vmem, size = 0x12000, scoped, tag = 'internal scratch']
  %s0 = inlined_call_operand.vmem [shape: f32[32,64], index: 0, kind: input, shape index: {}]
  %s1 = inlined_call_operand.vmem [shape: bf16[64,32], index: 1, kind: input, shape index: {}]
  %s2 = inlined_call_operand.vmem [shape: f32[1,32], index: 2, kind: input, shape index: {}]
  %s3 = inlined_call_operand.vmem [shape: f32[32,32], index: 3, kind: output, shape index: {}]
  %s4 = sld [smem:[#allocation0]]
  $region22: #{vision_transformer_forward.12} parent=0
    _
  %s6 = ssub.s32 1, %s4
  %s7 = scalar_select 0, %s6, %s4
  // Predicated region
  $region2: #{vision_transformer_forward.12} parent=0 // pred_check
    _
  $region3: #{vision_transformer_forward.12} parent=0 // pred_check_branch
    %9 = sbr.rel (0) target = $region5
  $region4: #{vision_transformer_forward.12} parent=0 // pred_region
    _
  $region5: #{vision_transformer_forward.12} parent=0 // pred_fallthru
    _
  // Predicated region
  $region6: #{vision_transformer_forward.12} parent=0 // pred_check
    _
  $region7: #{vision_transformer_forward.12} parent=0 // pred_check_branch
    %11 = sbr.rel (0) target = $region9
  $region8: #{vision_transformer_forward.12} parent=0 // pred_region
    _
  $region9: #{vision_transformer_forward.12} parent=0 // pred_fallthru
    _
  // Predicated region
  $region10: #{vision_transformer_forward.12} parent=0 // pred_check
    _
  $region11: #{vision_transformer_forward.12} parent=0 // pred_check_branch
    %13 = sbr.rel (0) target = $region13
  $region12: #{vision_transformer_forward.12} parent=0 // pred_region
    _
  $region13: #{vision_transformer_forward.12} parent=0 // pred_fallthru
    _
  %v15 = vld [vmem:[%s0] sm:$0xff]
  %v16 = vld [vmem:[%s0 + $0x8] sm:$0xff]
  %v17 = vld [vmem:[%s0 + $0x10] sm:$0xff]
  %v18 = vld [vmem:[%s0 + $0x18] sm:$0xff]
  %v19 = vpack.c.bf16 %v16, %v15
  %v20 = vpack.c.bf16 %v18, %v17
  %v21 = vld [vmem:[%s1] sm:$0xf]
  %v22 = vld [vmem:[%s1 + $0x4] sm:$0xf]
  %v23 = vld [vmem:[%s1 + $0x8] sm:$0xf]
  %v24 = vld [vmem:[%s1 + $0xc] sm:$0xf]
  %v25 = vld [vmem:[%s1 + $0x10] sm:$0xf]
  %v26 = vld [vmem:[%s1 + $0x14] sm:$0xf]
  %v27 = vld [vmem:[%s1 + $0x18] sm:$0xf]
  %v28 = vld [vmem:[%s1 + $0x1c] sm:$0xf]
  %v29 = vld [vmem:[%s2] sm:$0x1]
  %v31 = vlaneseq
  %v32 = vshrl.u32 %v31, 7
  %v33 = vsub.s32 0, %v32
  %v34 = vrot.slane %v29, %v33
  %v44 = vunpack.c.l.b16 %v21
  %v45 = vunpack.c.l.b16 %v22
  %v46 = vunpack.c.l.b16 %v23
  %v47 = vunpack.c.l.b16 %v24
  %v48 = vunpack.c.l.b16 %v25
  %v49 = vunpack.c.l.b16 %v26
  %v50 = vunpack.c.l.b16 %v27
  %v51 = vunpack.c.l.b16 %v28
  %v52 = vpack.c.b16 %v45, %v44
  %v53 = vpack.c.b16 %v47, %v46
  %v54 = vpack.c.b16 %v49, %v48
  %v55 = vpack.c.b16 %v51, %v50
  %vm60 = vcmask 523264
  %v62 = vsel %vm60, %v19, 0
  %v65 = vsel %vm60, %v20, 0
  %67 = vmatprep.subr.bf16.mxu0 0
  %68 = vmatpush1.bf16.msra.mxu0 %v52
  %69 = vmatprep.subr.bf16.mxu0 0
  %70 = vmatpush1.bf16.msra.mxu0 %v53
  %71 = vmatprep.subr.bf16.mxu0 0
  %72 = vmatpush1.bf16.msra.mxu0 %v54
  %73 = vmatprep.subr.bf16.mxu0 0
  %74 = vmatpush1.bf16.msra.mxu0 %v55
  %75 = vmatprep.subr.bf16.mxu0 0
  %76 = vmatpush1.bf16.msra.mxu0 0
  %77 = vmatprep.subr.bf16.mxu0 0
  %78 = vmatpush1.bf16.msra.mxu0 0
  %79 = vmatprep.subr.bf16.mxu0 0
  %80 = vmatpush1.bf16.msra.mxu0 0
  %81 = vmatprep.subr.bf16.mxu0 0
  %82 = vmatpush1.bf16.msra.mxu0 0
  %83 = vmatprep.subr.bf16.mxu0 0
  %84 = vmatpush1.bf16.msra.mxu0 0
  %85 = vmatprep.subr.bf16.mxu0 0
  %86 = vmatpush1.bf16.msra.mxu0 0
  %87 = vmatprep.subr.bf16.mxu0 0
  %88 = vmatpush1.bf16.msra.mxu0 0
  %89 = vmatprep.subr.bf16.mxu0 0
  %90 = vmatpush1.bf16.msra.mxu0 0
  %91 = vmatprep.subr.bf16.mxu0 0
  %92 = vmatpush1.bf16.msra.mxu0 0
  %93 = vmatprep.subr.bf16.mxu0 0
  %94 = vmatpush1.bf16.msra.mxu0 0
  %95 = vmatprep.subr.bf16.mxu0 0
  %96 = vmatpush1.bf16.msra.mxu0 0
  %97 = vmatprep.subr.bf16.mxu0 0
  %98 = vmatpush1.bf16.msra.mxu0 0
  %99 = vmatprep.mubr.bf16.mxu0 0
  %100 = vmatmul.mubr.bf16.gmra.mrb[0].mxu0 %v62
  %v101 = vpop.f32.mrb[0].mxu0
  %v102 = vadd.f32 %v34, %v101
  %v103 = vpop.f32.mrb[0].mxu0
  %v104 = vpop.f32.mrb[0].mxu0
  %v105 = vadd.f32 %v34, %v104
  %v106 = vpop.f32.mrb[0].mxu0
  %107 = vmatprep.mubr.bf16.mxu0 0
  %108 = vmatmul.mubr.bf16.gmra.mrb[0].mxu0 %v65
  %v109 = vpop.f32.mrb[0].mxu0
  %v110 = vadd.f32 %v34, %v109
  %v111 = vpop.f32.mrb[0].mxu0
  %v112 = vpop.f32.mrb[0].mxu0
  %v113 = vadd.f32 %v34, %v112
  %v114 = vpop.f32.mrb[0].mxu0
  %115 = vdwg.mxu0
  %vm116 = vcmask 261120
  %117 = vst.msk [vmem:[%s3] sm:$0xff] %vm116, %v102
  %118 = vst.msk [vmem:[%s3 + $0x8] sm:$0xff] %vm116, %v105
  %119 = vst.msk [vmem:[%s3 + $0x10] sm:$0xff] %vm116, %v110
  %120 = vst.msk [vmem:[%s3 + $0x18] sm:$0xff] %vm116, %v113
  // Predicated region
  $region14: #{vision_transformer_forward.12} parent=0 // pred_check
    _
  $region15: #{vision_transformer_forward.12} parent=0 // pred_check_branch
    %122 = sbr.rel (0) target = $region17
  $region16: #{vision_transformer_forward.12} parent=0 // pred_region
    _
  $region17: #{vision_transformer_forward.12} parent=0 // pred_fallthru
    _
  // Predicated region
  $region18: #{vision_transformer_forward.12} parent=0 // pred_check
    _
  $region19: #{vision_transformer_forward.12} parent=0 // pred_check_branch
    %124 = sbr.rel (0) target = $region21
  $region20: #{vision_transformer_forward.12} parent=0 // pred_region
    _
  $region21: #{vision_transformer_forward.12} parent=0 // pred_fallthru
    _

// kernel: vision_transformer_forward.13
$region0: #{vision_transformer_forward.13}
  #allocation0 [shape = 'u32[]', space=smem, size = 0x4, offset = 0x4, fixed_abs, tag = 'smem constant byte address 0x4 - core index']
  #allocation1 [shape = 'u32[144,128]{1,0:T(1,128)}', space=vmem, size = 0x12000, scoped, tag = 'internal scratch']
  %s0 = inlined_call_operand.vmem [shape: bf16[48,32], index: 0, kind: input, shape index: {}]
  %s1 = inlined_call_operand.vmem [shape: bf16[32,96], index: 1, kind: input, shape index: {}]
  %s2 = inlined_call_operand.vmem [shape: f32[1,96], index: 2, kind: input, shape index: {}]
  %s3 = inlined_call_operand.vmem [shape: bf16[48,96], index: 3, kind: output, shape index: {}]
  %s4 = sld [smem:[#allocation0]]
  $region22: #{vision_transformer_forward.13} parent=0
    _
  %s6 = ssub.s32 1, %s4
  %s7 = scalar_select 0, %s6, %s4
  // Predicated region
  $region2: #{vision_transformer_forward.13} parent=0 // pred_check
    _
  $region3: #{vision_transformer_forward.13} parent=0 // pred_check_branch
    %9 = sbr.rel (0) target = $region5
  $region4: #{vision_transformer_forward.13} parent=0 // pred_region
    _
  $region5: #{vision_transformer_forward.13} parent=0 // pred_fallthru
    _
  // Predicated region
  $region6: #{vision_transformer_forward.13} parent=0 // pred_check
    _
  $region7: #{vision_transformer_forward.13} parent=0 // pred_check_branch
    %11 = sbr.rel (0) target = $region9
  $region8: #{vision_transformer_forward.13} parent=0 // pred_region
    _
  $region9: #{vision_transformer_forward.13} parent=0 // pred_fallthru
    _
  // Predicated region
  $region10: #{vision_transformer_forward.13} parent=0 // pred_check
    _
  $region11: #{vision_transformer_forward.13} parent=0 // pred_check_branch
    %13 = sbr.rel (0) target = $region13
  $region12: #{vision_transformer_forward.13} parent=0 // pred_region
    _
  $region13: #{vision_transformer_forward.13} parent=0 // pred_fallthru
    _
  %v15 = vld [vmem:[%s0] sm:$0xf]
  %v16 = vld [vmem:[%s0 + $0x4] sm:$0xf]
  %v17 = vld [vmem:[%s0 + $0x8] sm:$0xf]
  %v18 = vld [vmem:[%s0 + $0xc] sm:$0xf]
  %v19 = vld [vmem:[%s0 + $0x10] sm:$0xf]
  %v20 = vld [vmem:[%s0 + $0x14] sm:$0xf]
  %v21 = vld [vmem:[%s1] sm:$0xf]
  %v22 = vld [vmem:[%s1 + $0x4] sm:$0xf]
  %v23 = vld [vmem:[%s1 + $0x8] sm:$0xf]
  %v24 = vld [vmem:[%s1 + $0xc] sm:$0xf]
  %v25 = vld [vmem:[%s2] sm:$0x1]
  %v27 = vlaneseq
  %v28 = vshrl.u32 %v27, 7
  %v29 = vsub.s32 0, %v28
  %v30 = vrot.slane %v25, %v29
  %v38 = vunpack.c.l.b16 %v15
  %v39 = vunpack.c.l.b16 %v16
  %v40 = vunpack.c.l.b16 %v17
  %v41 = vunpack.c.l.b16 %v18
  %v42 = vunpack.c.l.b16 %v19
  %v43 = vunpack.c.l.b16 %v20
  %v44 = vpack.c.b16 %v39, %v38
  %v45 = vpack.c.b16 %v41, %v40
  %v46 = vpack.c.b16 %v43, %v42
  %v51 = vunpack.c.l.b16 %v21
  %v52 = vunpack.c.l.b16 %v22
  %v53 = vunpack.c.l.b16 %v23
  %v54 = vunpack.c.l.b16 %v24
  %v55 = vpack.c.b16 %v52, %v51
  %v56 = vpack.c.b16 %v54, %v53
  %vm59 = vcmask 261120
  %v61 = vsel %vm59, %v44, 0
  %v64 = vsel %vm59, %v45, 0
  %v67 = vsel %vm59, %v46, 0
  %69 = vmatprep.subr.bf16.mxu0 0
  %70 = vmatpush1.bf16.msra.mxu0 %v55
  %71 = vmatprep.subr.bf16.mxu0 0
  %72 = vmatpush1.bf16.msra.mxu0 %v56
  %73 = vmatprep.subr.bf16.mxu0 0
  %74 = vmatpush1.bf16.msra.mxu0 0
  %75 = vmatprep.subr.bf16.mxu0 0
  %76 = vmatpush1.bf16.msra.mxu0 0
  %77 = vmatprep.subr.bf16.mxu0 0
  %78 = vmatpush1.bf16.msra.mxu0 0
  %79 = vmatprep.subr.bf16.mxu0 0
  %80 = vmatpush1.bf16.msra.mxu0 0
  %81 = vmatprep.subr.bf16.mxu0 0
  %82 = vmatpush1.bf16.msra.mxu0 0
  %83 = vmatprep.subr.bf16.mxu0 0
  %84 = vmatpush1.bf16.msra.mxu0 0
  %85 = vmatprep.subr.bf16.mxu0 0
  %86 = vmatpush1.bf16.msra.mxu0 0
  %87 = vmatprep.subr.bf16.mxu0 0
  %88 = vmatpush1.bf16.msra.mxu0 0
  %89 = vmatprep.subr.bf16.mxu0 0
  %90 = vmatpush1.bf16.msra.mxu0 0
  %91 = vmatprep.subr.bf16.mxu0 0
  %92 = vmatpush1.bf16.msra.mxu0 0
  %93 = vmatprep.subr.bf16.mxu0 0
  %94 = vmatpush1.bf16.msra.mxu0 0
  %95 = vmatprep.subr.bf16.mxu0 0
  %96 = vmatpush1.bf16.msra.mxu0 0
  %97 = vmatprep.subr.bf16.mxu0 0
  %98 = vmatpush1.bf16.msra.mxu0 0
  %99 = vmatprep.subr.bf16.mxu0 0
  %100 = vmatpush1.bf16.msra.mxu0 0
  %101 = vmatprep.mubr.bf16.mxu0 0
  %102 = vmatmul.mubr.bf16.gmra.mrb[0].mxu0 %v61
  %v103 = vpop.f32.mrb[0].mxu0
  %v104 = vadd.f32 %v30, %v103
  %v105 = vpop.f32.mrb[0].mxu0
  %v106 = vpop.f32.mrb[0].mxu0
  %v107 = vadd.f32 %v30, %v106
  %v108 = vpop.f32.mrb[0].mxu0
  %109 = vmatprep.mubr.bf16.mxu0 0
  %110 = vmatmul.mubr.bf16.gmra.mrb[0].mxu0 %v64
  %v111 = vpop.f32.mrb[0].mxu0
  %v112 = vadd.f32 %v30, %v111
  %v113 = vpop.f32.mrb[0].mxu0
  %v114 = vpop.f32.mrb[0].mxu0
  %v115 = vadd.f32 %v30, %v114
  %v116 = vpop.f32.mrb[0].mxu0
  %117 = vmatprep.mubr.bf16.mxu0 0
  %118 = vmatmul.mubr.bf16.gmra.mrb[0].mxu0 %v67
  %v119 = vpop.f32.mrb[0].mxu0
  %v120 = vadd.f32 %v30, %v119
  %v121 = vpop.f32.mrb[0].mxu0
  %v122 = vpop.f32.mrb[0].mxu0
  %v123 = vadd.f32 %v30, %v122
  %v124 = vpop.f32.mrb[0].mxu0
  %125 = vdwg.mxu0
  %v126 = vpack.c.bf16 %v107, %v104
  %v127 = vpack.c.bf16 %v115, %v112
  %v128 = vpack.c.bf16 %v123, %v120
  %v132 = vunpack.c.l.b16 %v126
  %v133 = vunpack.c.h.b16 %v126
  %v134 = vunpack.c.l.b16 %v127
  %v135 = vunpack.c.h.b16 %v127
  %v136 = vunpack.c.l.b16 %v128
  %v137 = vunpack.c.h.b16 %v128
  %v138 = vpack.c.b16 %v132, %v132
  %v139 = vpack.c.b16 %v133, %v133
  %v140 = vpack.c.b16 %v134, %v134
  %v141 = vpack.c.b16 %v135, %v135
  %v142 = vpack.c.b16 %v136, %v136
  %v143 = vpack.c.b16 %v137, %v137
  %vm150 = vcmask 781312
  %151 = vst.msk [vmem:[%s3] sm:$0xf] %vm150, %v138
  %152 = vst.msk [vmem:[%s3 + $0x4] sm:$0xf] %vm150, %v139
  %153 = vst.msk [vmem:[%s3 + $0x8] sm:$0xf] %vm150, %v140
  %154 = vst.msk [vmem:[%s3 + $0xc] sm:$0xf] %vm150, %v141
  %155 = vst.msk [vmem:[%s3 + $0x10] sm:$0xf] %vm150, %v142
  %156 = vst.msk [vmem:[%s3 + $0x14] sm:$0xf] %vm150, %v143
  // Predicated region
  $region14: #{vision_transformer_forward.13} parent=0 // pred_check
    _
  $region15: #{vision_transformer_forward.13} parent=0 // pred_check_branch
    %158 = sbr.rel (0) target = $region17
  $region16: #{vision_transformer_forward.13} parent=0 // pred_region
    _
  $region17: #{vision_transformer_forward.13} parent=0 // pred_fallthru
    _
  // Predicated region
  $region18: #{vision_transformer_forward.13} parent=0 // pred_check
    _
  $region19: #{vision_transformer_forward.13} parent=0 // pred_check_branch
    %160 = sbr.rel (0) target = $region21
  $region20: #{vision_transformer_forward.13} parent=0 // pred_region
    _
  $region21: #{vision_transformer_forward.13} parent=0 // pred_fallthru
    _

// kernel: vision_transformer_forward.14
$region0: #{vision_transformer_forward.14}
  #allocation0 [shape = 'u32[]', space=smem, size = 0x4, offset = 0x4, fixed_abs, tag = 'smem constant byte address 0x4 - core index']
  #allocation1 [shape = 'u32[144,128]{1,0:T(1,128)}', space=vmem, size = 0x12000, scoped, tag = 'internal scratch']
  %s0 = inlined_call_operand.vmem [shape: bf16[2,4,24,8], index: 0, kind: input, shape index: {}]
  %s1 = inlined_call_operand.vmem [shape: bf16[2,4,24,8], index: 1, kind: input, shape index: {}]
  %s2 = inlined_call_operand.vmem [shape: bf16[2,4,24,8], index: 2, kind: input, shape index: {}]
  %s3 = inlined_call_operand.vmem [shape: bf16[2,4,24,8], index: 3, kind: output, shape index: {}]
  %s4 = sld [smem:[#allocation0]]
  $region45: #{vision_transformer_forward.14} parent=0
    _
  %s6 = ssub.s32 1, %s4
  %s7 = scalar_select 0, %s6, %s4
  loop: start=0, step=1, limit=10
  $region2: #{vision_transformer_forward.14} parent=0 // loop_pre_header
    _
  $region3: #{vision_transformer_forward.14} parent=0 // loop_header
    %s9 = sphi 0, %s13
    %p10 = scmp.ge.s32.totalorder %s9, 10
    %s16 = sphi 0, %s35
    %s17 = sphi 0, %s31
    %s18 = sphi 0, %s27
    %s19 = sphi 0, %s16
    %s20 = sphi 0, %s17
    %s21 = sphi 0, %s18
    %s22 = sphi 0, %s19
    %s23 = sphi 0, %s20
    %s24 = sphi 0, %s21
    %s42 = sphi 0, %s44
    %s45 = sphi 0, %s42
    %s46 = sphi 0, %s45
    %s62 = sphi 0, %s46
    %s70 = sphi 0, %s72
    %s73 = sphi 0, %s70
    %s74 = sphi 0, %s73
    %s90 = sphi 0, %s74
    %s98 = sphi 0, %s100
    %s101 = sphi 0, %s98
    %s102 = sphi 0, %s101
    %s118 = sphi 0, %s102
    %s128 = sphi 0, %s130
    %s131 = sphi 0, %s128
    %s132 = sphi 0, %s131
    %s148 = sphi 0, %s132
  $region4: #{vision_transformer_forward.14} parent=0 // loop_header_branch
    %12 = sbr.rel (%p10) target = $region8
  $region5: #{vision_transformer_forward.14} parent=0 // loop_body
    %s14 = ssub.s32 %s9, 1
    %s15 = ssub.s32 %s9, 2
    %s25 = sadd.s32 1, %s18
    %p26 = scmp.ge.s32.totalorder %s25, 1
    %s27 = scalar_select %p26, 0, %s25
    %s28 = sadd.s32 1, %s17
    %s29 = scalar_select %p26, %s28, %s17
    %p30 = scmp.ge.s32.totalorder %s29, 4
    %s31 = scalar_select %p30, 0, %s29
    %s32 = sadd.s32 1, %s16
    %s33 = scalar_select %p30, %s32, %s16
    %p34 = scmp.ge.s32.totalorder %s33, 2
    %s35 = scalar_select %p34, 0, %s33
    %s36 = ssub.s32 %s16, %s35
    %s37 = ssub.s32 %s17, %s31
    %s38 = sor.u32 %s36, %s37
    %s39 = ssub.s32 %s18, %s27
    %s40 = sor.u32 %s38, %s39
    %p41 = scmp.eq.s32.totalorder %s40, 0
    %s43 = sadd.s32 %s42, 1
    %s44 = scalar_select %p41, %s42, %s43
    %p47 = pneg %p41
    %p48 = scmp.eq.s32.totalorder %s9, 7
    %p49 = por %p47, %p48
    %p50 = scmp.ne.s32.totalorder %s42, %s45
    %p51 = scmp.eq.s32.totalorder %s9, 0
    %p52 = por %p50, %p51
    %p53 = scmp.ne.s32.totalorder %s42, %s45
    %p54 = scmp.eq.s32.totalorder %s14, 7
    %p55 = por %p53, %p54
    %p56 = scmp.ne.s32.totalorder %s45, %s46
    %p57 = scmp.eq.s32.totalorder %s14, 0
    %p58 = por %p56, %p57
    %p59 = scmp.ne.s32.totalorder %s45, %s46
    %p60 = scmp.eq.s32.totalorder %s15, 7
    %p61 = por %p59, %p60
    %p63 = scmp.ne.s32.totalorder %s46, %s62
    %p64 = scmp.eq.s32.totalorder %s15, 0
    %p65 = por %p63, %p64
    %s66 = ssub.s32 %s16, %s35
    %s67 = ssub.s32 %s17, %s31
    %s68 = sor.u32 %s66, %s67
    %p69 = scmp.eq.s32.totalorder %s68, 0
    %s71 = sadd.s32 %s70, 1
    %s72 = scalar_select %p69, %s70, %s71
    %p75 = pneg %p69
    %p76 = scmp.eq.s32.totalorder %s9, 7
    %p77 = por %p75, %p76
    %p78 = scmp.ne.s32.totalorder %s70, %s73
    %p79 = scmp.eq.s32.totalorder %s9, 0
    %p80 = por %p78, %p79
    %p81 = scmp.ne.s32.totalorder %s70, %s73
    %p82 = scmp.eq.s32.totalorder %s14, 7
    %p83 = por %p81, %p82
    %p84 = scmp.ne.s32.totalorder %s73, %s74
    %p85 = scmp.eq.s32.totalorder %s14, 0
    %p86 = por %p84, %p85
    %p87 = scmp.ne.s32.totalorder %s73, %s74
    %p88 = scmp.eq.s32.totalorder %s15, 7
    %p89 = por %p87, %p88
    %p91 = scmp.ne.s32.totalorder %s74, %s90
    %p92 = scmp.eq.s32.totalorder %s15, 0
    %p93 = por %p91, %p92
    %s94 = ssub.s32 %s16, %s35
    %s95 = ssub.s32 %s17, %s31
    %s96 = sor.u32 %s94, %s95
    %p97 = scmp.eq.s32.totalorder %s96, 0
    %s99 = sadd.s32 %s98, 1
    %s100 = scalar_select %p97, %s98, %s99
    %p103 = pneg %p97
    %p104 = scmp.eq.s32.totalorder %s9, 7
    %p105 = por %p103, %p104
    %p106 = scmp.ne.s32.totalorder %s98, %s101
    %p107 = scmp.eq.s32.totalorder %s9, 0
    %p108 = por %p106, %p107
    %p109 = scmp.ne.s32.totalorder %s98, %s101
    %p110 = scmp.eq.s32.totalorder %s14, 7
    %p111 = por %p109, %p110
    %p112 = scmp.ne.s32.totalorder %s101, %s102
    %p113 = scmp.eq.s32.totalorder %s14, 0
    %p114 = por %p112, %p113
    %p115 = scmp.ne.s32.totalorder %s101, %s102
    %p116 = scmp.eq.s32.totalorder %s15, 7
    %p117 = por %p115, %p116
    %p119 = scmp.ne.s32.totalorder %s102, %s118
    %p120 = scmp.eq.s32.totalorder %s15, 0
    %p121 = por %p119, %p120
    %s122 = ssub.s32 %s16, %s35
    %s123 = ssub.s32 %s17, %s31
    %s124 = sor.u32 %s122, %s123
    %s125 = ssub.s32 %s18, %s27
    %s126 = sor.u32 %s124, %s125
    %p127 = scmp.eq.s32.totalorder %s126, 0
    %s129 = sadd.s32 %s128, 1
    %s130 = scalar_select %p127, %s128, %s129
    %p133 = pneg %p127
    %p134 = scmp.eq.s32.totalorder %s9, 7
    %p135 = por %p133, %p134
    %p136 = scmp.ne.s32.totalorder %s128, %s131
    %p137 = scmp.eq.s32.totalorder %s9, 0
    %p138 = por %p136, %p137
    %p139 = scmp.ne.s32.totalorder %s128, %s131
    %p140 = scmp.eq.s32.totalorder %s14, 7
    %p141 = por %p139, %p140
    %p142 = scmp.ne.s32.totalorder %s131, %s132
    %p143 = scmp.eq.s32.totalorder %s14, 0
    %p144 = por %p142, %p143
    %p145 = scmp.ne.s32.totalorder %s131, %s132
    %p146 = scmp.eq.s32.totalorder %s15, 7
    %p147 = por %p145, %p146
    %p149 = scmp.ne.s32.totalorder %s132, %s148
    %p150 = scmp.eq.s32.totalorder %s15, 0
    %p151 = por %p149, %p150
    %p152 = scmp.le.s32.totalorder 1, %s9
    %p153 = scmp.lt.s32.totalorder %s9, 9
    %p154 = pnand %p152, %p153
    %p155 = pneg %p154
    // Predicated region
    $region9: #{vision_transformer_forward.14} parent=5 // pred_check
      _
    $region10: #{vision_transformer_forward.14} parent=5 // pred_check_branch
      %157 = sbr.rel (%p154) target = $region12
    $region11: #{vision_transformer_forward.14} parent=5 // pred_region
      %s158 = ssub.s32 %s9, 1
    $region12: #{vision_transformer_forward.14} parent=5 // pred_fallthru
      _
    %p159 = scmp.lt.s32.totalorder %s9, 8
    // Predicated region
    $region13: #{vision_transformer_forward.14} parent=5 // pred_check
      %p160 = pneg %p159
    $region14: #{vision_transformer_forward.14} parent=5 // pred_check_branch
      %162 = sbr.rel (%p160) target = $region16
    $region15: #{vision_transformer_forward.14} parent=5 // pred_region
      // Predicated region
      $region17: #{vision_transformer_forward.14} parent=15 // pred_check
        %p163 = pneg %p52
      $region18: #{vision_transformer_forward.14} parent=15 // pred_check_branch
        %165 = sbr.rel (%p163) target = $region20
      $region19: #{vision_transformer_forward.14} parent=15 // pred_region
        %s166 = smul.u32 3, %s18
        %p167 = scmp.lt.s32.totalorder %s16, 1
        %s168 = scalar_select %p167, %s16, 1
        %p169 = scmp.lt.s32.totalorder %s17, 3
        %s170 = scalar_select %p169, %s17, 3
        %p171 = scmp.lt.s32.totalorder %s166, 2
        %s172 = scalar_select %p171, %s166, 2
        %s173 = smul.addr %s170, 3
        %s174 = sadd.s32 %s172, %s173
        %s175 = smul.addr %s168, 12
        %s176 = sadd.s32 %s174, %s175
        %s177 = smul.addr %s176, 4
        %s178 = scalar_lea.vmem %s0, %s177
        %s179 = smul.u32 3, %s18
      $region20: #{vision_transformer_forward.14} parent=15 // pred_fallthru
        _
      // Predicated region
      $region21: #{vision_transformer_forward.14} parent=15 // pred_check
        %p180 = pneg %p80
      $region22: #{vision_transformer_forward.14} parent=15 // pred_check_branch
        %182 = sbr.rel (%p180) target = $region24
      $region23: #{vision_transformer_forward.14} parent=15 // pred_region
        %p183 = scmp.lt.s32.totalorder %s16, 1
        %s184 = scalar_select %p183, %s16, 1
        %p185 = scmp.lt.s32.totalorder %s17, 3
        %s186 = scalar_select %p185, %s17, 3
        %s187 = smul.addr %s186, 3
        %s188 = smul.addr %s184, 12
        %s189 = sadd.s32 %s187, %s188
        %s190 = smul.addr %s189, 4
        %s191 = scalar_lea.vmem %s1, %s190
      $region24: #{vision_transformer_forward.14} parent=15 // pred_fallthru
        _
      // Predicated region
      $region25: #{vision_transformer_forward.14} parent=15 // pred_check
        %p192 = pneg %p108
      $region26: #{vision_transformer_forward.14} parent=15 // pred_check_branch
        %194 = sbr.rel (%p192) target = $region28
      $region27: #{vision_transformer_forward.14} parent=15 // pred_region
        %p195 = scmp.lt.s32.totalorder %s16, 1
        %s196 = scalar_select %p195, %s16, 1
        %p197 = scmp.lt.s32.totalorder %s17, 3
        %s198 = scalar_select %p197, %s17, 3
        %s199 = smul.addr %s198, 3
        %s200 = smul.addr %s196, 12
        %s201 = sadd.s32 %s199, %s200
        %s202 = smul.addr %s201, 4
        %s203 = scalar_lea.vmem %s2, %s202
      $region28: #{vision_transformer_forward.14} parent=15 // pred_fallthru
        _
    $region16: #{vision_transformer_forward.14} parent=5 // pred_fallthru
      _
    %p204 = scmp.le.s32.totalorder 1, %s9
    %p205 = scmp.lt.s32.totalorder %s9, 9
    %p206 = pnand %p204, %p205
    %p207 = pneg %p206
    // Predicated region
    $region29: #{vision_transformer_forward.14} parent=5 // pred_check
      _
    $region30: #{vision_transformer_forward.14} parent=5 // pred_check_branch
      %209 = sbr.rel (%p206) target = $region32
    $region31: #{vision_transformer_forward.14} parent=5 // pred_region
      %s210 = ssub.s32 %s9, 1
      %s211 = smul.u32 3, %s21
      %p212 = scmp.lt.s32.totalorder %s19, 1
      %s213 = scalar_select %p212, %s19, 1
      %p214 = scmp.lt.s32.totalorder %s20, 3
      %s215 = scalar_select %p214, %s20, 3
      %p216 = scmp.lt.s32.totalorder %s211, 2
      %s217 = scalar_select %p216, %s211, 2
      %s218 = smul.addr %s215, 3
      %s219 = sadd.s32 %s217, %s218
      %s220 = smul.addr %s213, 12
      %s221 = sadd.s32 %s219, %s220
      %s222 = smul.addr %s221, 4
      %s223 = scalar_lea.vmem %s0, %s222
      %p224 = pneg %p58
      %p225 = pneg %p55
      %p226 = scmp.lt.s32.totalorder %s19, 1
      %s227 = scalar_select %p226, %s19, 1
      %p228 = scmp.lt.s32.totalorder %s20, 3
      %s229 = scalar_select %p228, %s20, 3
      %s230 = smul.addr %s229, 3
      %s231 = smul.addr %s227, 12
      %s232 = sadd.s32 %s230, %s231
      %s233 = smul.addr %s232, 4
      %s234 = scalar_lea.vmem %s1, %s233
      %p235 = pneg %p86
      %p236 = pneg %p83
      %p237 = scmp.lt.s32.totalorder %s19, 1
      %s238 = scalar_select %p237, %s19, 1
      %p239 = scmp.lt.s32.totalorder %s20, 3
      %s240 = scalar_select %p239, %s20, 3
      %s241 = smul.addr %s240, 3
      %s242 = smul.addr %s238, 12
      %s243 = sadd.s32 %s241, %s242
      %s244 = smul.addr %s243, 4
      %s245 = scalar_lea.vmem %s2, %s244
      %p246 = pneg %p114
      %p247 = pneg %p111
      %p248 = pneg %p144
      %p249 = pneg %p141
      %s250 = smul.u32 3, %s21
      %p251 = scmp.lt.s32.totalorder %s19, 1
      %s252 = scalar_select %p251, %s19, 1
      %p253 = scmp.lt.s32.totalorder %s20, 3
      %s254 = scalar_select %p253, %s20, 3
      %p255 = scmp.lt.s32.totalorder %s250, 2
      %s256 = scalar_select %p255, %s250, 2
      %s257 = smul.addr %s254, 3
      %s258 = sadd.s32 %s256, %s257
      %s259 = smul.addr %s252, 12
      %s260 = sadd.s32 %s258, %s259
      %s261 = smul.addr %s260, 4
      %s262 = scalar_lea.vmem %s3, %s261
      %s263 = smul.u32 3, %s21
      %p264 = scmp.lt.s32.totalorder %s19, 1
      %s265 = scalar_select %p264, %s19, 1
      %p266 = scmp.lt.s32.totalorder %s20, 3
      %s267 = scalar_select %p266, %s20, 3
      %p268 = scmp.lt.s32.totalorder %s263, 2
      %s269 = scalar_select %p268, %s263, 2
      %s270 = smul.addr %s267, 3
      %s271 = sadd.s32 %s269, %s270
      %s272 = smul.addr %s265, 12
      %s273 = sadd.s32 %s271, %s272
      %s274 = smul.addr %s273, 4
      %s275 = scalar_lea.vmem %s0, %s274
      %s276 = smul.u32 3, %s21
      %p277 = scmp.lt.s32.totalorder %s19, 1
      %s278 = scalar_select %p277, %s19, 1
      %p279 = scmp.lt.s32.totalorder %s20, 3
      %s280 = scalar_select %p279, %s20, 3
      %s281 = smul.addr %s280, 3
      %s282 = smul.addr %s278, 12
      %s283 = sadd.s32 %s281, %s282
      %s284 = smul.addr %s283, 4
      %s285 = scalar_lea.vmem %s1, %s284
      %p286 = scmp.lt.s32.totalorder %s19, 1
      %s287 = scalar_select %p286, %s19, 1
      %p288 = scmp.lt.s32.totalorder %s20, 3
      %s289 = scalar_select %p288, %s20, 3
      %s290 = smul.addr %s289, 3
      %s291 = smul.addr %s287, 12
      %s292 = sadd.s32 %s290, %s291
      %s293 = smul.addr %s292, 4
      %s294 = scalar_lea.vmem %s2, %s293
      %s295 = smul.u32 3, %s21
      %p296 = scmp.lt.s32.totalorder %s19, 1
      %s297 = scalar_select %p296, %s19, 1
      %p298 = scmp.lt.s32.totalorder %s20, 3
      %s299 = scalar_select %p298, %s20, 3
      %p300 = scmp.lt.s32.totalorder %s295, 2
      %s301 = scalar_select %p300, %s295, 2
      %s302 = smul.addr %s299, 3
      %s303 = sadd.s32 %s301, %s302
      %s304 = smul.addr %s297, 12
      %s305 = sadd.s32 %s303, %s304
      %s306 = smul.addr %s305, 4
      %s307 = scalar_lea.vmem %s3, %s306
      %s308 = smul.u32 3, %s21
      %v310 = vld [vmem:[%s275] sm:$0xf]
      %v311 = vld [vmem:[%s275 + $0x4] sm:$0xf]
      %v312 = vld [vmem:[%s275 + $0x8] sm:$0xf]
      %v313 = vunpack.c.l.bf16 %v310
      %v314 = vunpack.c.l.bf16 %v311
      %v315 = vunpack.c.l.bf16 %v312
      %v316 = vmul.f32 %v313, 0.35355338
      %v317 = vmul.f32 %v314, 0.35355338
      %v318 = vmul.f32 %v315, 0.35355338
      %v319 = vpack.c.bf16 %v317, %v316
      %v320 = vpack.c.bf16 %v318, %v318
      %v321 = vld [vmem:[%s285] sm:$0xf]
      %v322 = vld [vmem:[%s285 + $0x4] sm:$0xf]
      %v323 = vld [vmem:[%s285 + $0x8] sm:$0xf]
      %v324 = vld [vmem:[%s294] sm:$0xf]
      %v325 = vld [vmem:[%s294 + $0x4] sm:$0xf]
      %v326 = vld [vmem:[%s294 + $0x8] sm:$0xf]
      %v330 = vunpack.c.l.b16 %v321
      %v331 = vunpack.c.l.b16 %v322
      %v332 = vunpack.c.l.b16 %v323
      %v333 = vpack.c.b16 %v331, %v330
      %v334 = vpack.c.b16 %v332, %v332
      %vm335 = vcmask 64512
      %v337 = vsel %vm335, %v319, 0
      %v340 = vsel %vm335, %v320, 0
      %v343 = vsel %vm335, %v333, 0
      %v346 = vsel %vm335, %v334, 0
      %348 = vmatprep.subr.bf16.mxu0 0
      %349 = vmatpush1.bf16.xpose.msra.mxu0 %v343
      %350 = vmatprep.subr.bf16.mxu0 0
      %351 = vmatpush1.bf16.xpose.msra.mxu0 %v346
      %352 = vmatprep.subr.bf16.mxu0 0
      %353 = vmatpush1.bf16.xpose.msra.mxu0 0
      %354 = vmatprep.subr.bf16.mxu0 0
      %355 = vmatpush1.bf16.xpose.msra.mxu0 0
      %356 = vmatprep.subr.bf16.mxu0 0
      %357 = vmatpush1.bf16.xpose.msra.mxu0 0
      %358 = vmatprep.subr.bf16.mxu0 0
      %359 = vmatpush1.bf16.xpose.msra.mxu0 0
      %360 = vmatprep.subr.bf16.mxu0 0
      %361 = vmatpush1.bf16.xpose.msra.mxu0 0
      %362 = vmatprep.subr.bf16.mxu0 0
      %363 = vmatpush1.bf16.xpose.msra.mxu0 0
      %364 = vmatprep.subr.bf16.mxu0 0
      %365 = vmatpush1.bf16.xpose.msra.mxu0 0
      %366 = vmatprep.subr.bf16.mxu0 0
      %367 = vmatpush1.bf16.xpose.msra.mxu0 0
      %368 = vmatprep.subr.bf16.mxu0 0
      %369 = vmatpush1.bf16.xpose.msra.mxu0 0
      %370 = vmatprep.subr.bf16.mxu0 0
      %371 = vmatpush1.bf16.xpose.msra.mxu0 0
      %372 = vmatprep.subr.bf16.mxu0 0
      %373 = vmatpush1.bf16.xpose.msra.mxu0 0
      %374 = vmatprep.subr.bf16.mxu0 0
      %375 = vmatpush1.bf16.xpose.msra.mxu0 0
      %376 = vmatprep.subr.bf16.mxu0 0
      %377 = vmatpush1.bf16.xpose.msra.mxu0 0
      %378 = vmatprep.subr.bf16.mxu0 0
      %379 = vmatpush1.bf16.xpose.msra.mxu0 0
      %380 = vmatprep.mubr.bf16.mxu0 0
      %381 = vmatmul.mubr.bf16.gmra.mrb[0].mxu0 %v337
      %v382 = vpop.f32.mrb[0].mxu0
      %v383 = vadd.f32 0.0, %v382
      %v384 = vpop.f32.mrb[0].mxu0
      %v385 = vpop.f32.mrb[0].mxu0
      %v386 = vadd.f32 0.0, %v385
      %v387 = vpop.f32.mrb[0].mxu0
      %388 = vmatprep.mubr.bf16.mxu0 0
      %389 = vmatmul.mubr.bf16.gmra.mrb[0].mxu0 %v340
      %v390 = vpop.f32.mrb[0].mxu0
      %v391 = vadd.f32 0.0, %v390
      %v392 = vpop.f32.mrb[0].mxu0
      %v393 = vpop.f32.mrb[0].mxu0
      %v394 = vpop.f32.mrb[0].mxu0
      %395 = vdwg.mxu0
      %v396 = vlaneseq
      %v397 = vand.u32 %v396, 127
      %vm398 = vcmp.lt.s32.totalorder %v397, 17
      %v399 = vsel %vm398, %v383, -1e+30
      %v400 = vsel %vm398, %v386, -1e+30
      %v401 = vsel %vm398, %v391, -1e+30
      %vm402 = vcmask 195584
      %v403 = vsel %vm402, %v399, -inf
      %404 = vmax.xlane.f32.xlu0 %v403
      %v405 = vpop.xlane.xlu0 %404
      %v406 = vsel %vm402, %v400, -inf
      %407 = vmax.xlane.f32.xlu0 %v406
      %v408 = vpop.xlane.xlu0 %407
      %v409 = vsel %vm402, %v401, -inf
      %410 = vmax.xlane.f32.xlu0 %v409
      %v411 = vpop.xlane.xlu0 %410
      %v412 = vsub.f32 %v399, %v405
      %v413 = vsub.f32 %v400, %v408
      %v414 = vsub.f32 %v401, %v411
      %v415 = vmul.f32 %v412, 1.442695
      %v416 = vpow.pop %v415
      %v417 = vmul.f32 %v413, 1.442695
      %v418 = vpow.pop %v417
      %v419 = vmul.f32 %v414, 1.442695
      %v420 = vpow.pop %v419
      %v421 = vsel %vm402, %v416, 0.0
      %422 = vadd.xlane.f32.xlu0 %v421
      %v423 = vpop.xlane.xlu0 %422
      %v424 = vsel %vm402, %v418, 0.0
      %425 = vadd.xlane.f32.xlu0 %v424
      %v426 = vpop.xlane.xlu0 %425
      %v427 = vsel %vm402, %v420, 0.0
      %428 = vadd.xlane.f32.xlu0 %v427
      %v429 = vpop.xlane.xlu0 %428
      %v430 = vpack.c.bf16 %v418, %v416
      %v431 = vpack.c.bf16 %v420, %v420
      %v435 = vunpack.c.l.b16 %v324
      %v436 = vunpack.c.l.b16 %v325
      %v437 = vunpack.c.l.b16 %v326
      %v438 = vpack.c.b16 %v436, %v435
      %v439 = vpack.c.b16 %v437, %v437
      %v442 = vsel %vm402, %v430, 0
      %v445 = vsel %vm402, %v431, 0
      %vm447 = vcmask 1043456
      %v449 = vsel %vm447, %v439, 0
      %451 = vmatprep.subr.bf16.mxu0 0
      %452 = vmatpush1.bf16.msra.mxu0 %v438
      %453 = vmatprep.subr.bf16.mxu0 0
      %454 = vmatpush1.bf16.msra.mxu0 %v449
      %455 = vmatprep.subr.bf16.mxu0 0
      %456 = vmatpush1.bf16.msra.mxu0 0
      %457 = vmatprep.subr.bf16.mxu0 0
      %458 = vmatpush1.bf16.msra.mxu0 0
      %459 = vmatprep.subr.bf16.mxu0 0
      %460 = vmatpush1.bf16.msra.mxu0 0
      %461 = vmatprep.subr.bf16.mxu0 0
      %462 = vmatpush1.bf16.msra.mxu0 0
      %463 = vmatprep.subr.bf16.mxu0 0
      %464 = vmatpush1.bf16.msra.mxu0 0
      %465 = vmatprep.subr.bf16.mxu0 0
      %466 = vmatpush1.bf16.msra.mxu0 0
      %467 = vmatprep.subr.bf16.mxu0 0
      %468 = vmatpush1.bf16.msra.mxu0 0
      %469 = vmatprep.subr.bf16.mxu0 0
      %470 = vmatpush1.bf16.msra.mxu0 0
      %471 = vmatprep.subr.bf16.mxu0 0
      %472 = vmatpush1.bf16.msra.mxu0 0
      %473 = vmatprep.subr.bf16.mxu0 0
      %474 = vmatpush1.bf16.msra.mxu0 0
      %475 = vmatprep.subr.bf16.mxu0 0
      %476 = vmatpush1.bf16.msra.mxu0 0
      %477 = vmatprep.subr.bf16.mxu0 0
      %478 = vmatpush1.bf16.msra.mxu0 0
      %479 = vmatprep.subr.bf16.mxu0 0
      %480 = vmatpush1.bf16.msra.mxu0 0
      %481 = vmatprep.subr.bf16.mxu0 0
      %482 = vmatpush1.bf16.msra.mxu0 0
      %483 = vmatprep.mubr.bf16.mxu0 0
      %484 = vmatmul.mubr.bf16.gmra.mrb[0].mxu0 %v442
      %v485 = vpop.f32.mrb[0].mxu0
      %v486 = vadd.f32 0.0, %v485
      %v487 = vpop.f32.mrb[0].mxu0
      %v488 = vpop.f32.mrb[0].mxu0
      %v489 = vadd.f32 0.0, %v488
      %v490 = vpop.f32.mrb[0].mxu0
      %491 = vmatprep.mubr.bf16.mxu0 0
      %492 = vmatmul.mubr.bf16.gmra.mrb[0].mxu0 %v445
      %v493 = vpop.f32.mrb[0].mxu0
      %v494 = vadd.f32 0.0, %v493
      %v495 = vpop.f32.mrb[0].mxu0
      %v496 = vpop.f32.mrb[0].mxu0
      %v497 = vpop.f32.mrb[0].mxu0
      %498 = vdwg.mxu0
      %v499 = vrcp.pop %v423
      %v500 = vrcp.pop %v426
      %v501 = vrcp.pop %v429
      %v502 = vmul.f32 %v486, %v499
      %v503 = vmul.f32 %v489, %v500
      %v504 = vmul.f32 %v494, %v501
      %v505 = vpack.c.bf16 %v503, %v502
      %v506 = vpack.c.bf16 %v504, %v504
      %v509 = vunpack.c.l.b16 %v505
      %v510 = vunpack.c.h.b16 %v505
      %v511 = vunpack.c.l.b16 %v506
      %v512 = vpack.c.b16 %v509, %v509
      %v513 = vpack.c.b16 %v510, %v510
      %v514 = vpack.c.b16 %v511, %v511
      %vm518 = vcmask 60416
      %519 = vst.msk [vmem:[%s307] sm:$0xf] %vm518, %v512
      %520 = vst.msk [vmem:[%s307 + $0x4] sm:$0xf] %vm518, %v513
      %521 = vst.msk [vmem:[%s307 + $0x8] sm:$0xf] %vm518, %v514
      %s522 = smul.u32 3, %s21
      %p523 = scmp.lt.s32.totalorder %s19, 1
      %s524 = scalar_select %p523, %s19, 1
      %p525 = scmp.lt.s32.totalorder %s20, 3
      %s526 = scalar_select %p525, %s20, 3
      %p527 = scmp.lt.s32.totalorder %s522, 2
      %s528 = scalar_select %p527, %s522, 2
      %s529 = smul.addr %s526, 3
      %s530 = sadd.s32 %s528, %s529
      %s531 = smul.addr %s524, 12
      %s532 = sadd.s32 %s530, %s531
      %s533 = smul.addr %s532, 4
      %s534 = scalar_lea.vmem %s3, %s533
      // Predicated region
      $region33: #{vision_transformer_forward.14} parent=31 // pred_check
        %p535 = pneg %p141
      $region34: #{vision_transformer_forward.14} parent=31 // pred_check_branch
        %537 = sbr.rel (%p535) target = $region36
      $region35: #{vision_transformer_forward.14} parent=31 // pred_region
        %s538 = smul.u32 3, %s21
      $region36: #{vision_transformer_forward.14} parent=31 // pred_fallthru
        _
    $region32: #{vision_transformer_forward.14} parent=5 // pred_fallthru
      _
    %p539 = scmp.le.s32.totalorder 2, %s9
    // Predicated region
    $region37: #{vision_transformer_forward.14} parent=5 // pred_check
      %p540 = pneg %p539
    $region38: #{vision_transformer_forward.14} parent=5 // pred_check_branch
      %542 = sbr.rel (%p540) target = $region40
    $region39: #{vision_transformer_forward.14} parent=5 // pred_region
      %s543 = ssub.s32 %s9, 2
      // Predicated region
      $region41: #{vision_transformer_forward.14} parent=39 // pred_check
        %p544 = pneg %p147
      $region42: #{vision_transformer_forward.14} parent=39 // pred_check_branch
        %546 = sbr.rel (%p544) target = $region44
      $region43: #{vision_transformer_forward.14} parent=39 // pred_region
        %s547 = smul.u32 3, %s24
        %p548 = scmp.lt.s32.totalorder %s22, 1
        %s549 = scalar_select %p548, %s22, 1
        %p550 = scmp.lt.s32.totalorder %s23, 3
        %s551 = scalar_select %p550, %s23, 3
        %p552 = scmp.lt.s32.totalorder %s547, 2
        %s553 = scalar_select %p552, %s547, 2
        %s554 = smul.addr %s551, 3
        %s555 = sadd.s32 %s553, %s554
        %s556 = smul.addr %s549, 12
        %s557 = sadd.s32 %s555, %s556
        %s558 = smul.addr %s557, 4
        %s559 = scalar_lea.vmem %s3, %s558
      $region44: #{vision_transformer_forward.14} parent=39 // pred_fallthru
        _
    $region40: #{vision_transformer_forward.14} parent=5 // pred_fallthru
      _
  $region6: #{vision_transformer_forward.14} parent=0 // loop_footer
    %s13 = sadd.s32 1, %s9
  $region7: #{vision_transformer_forward.14} parent=0 // loop_footer_branch
    %8 = sbr.rel target = $region3
  $region8: #{vision_transformer_forward.14} parent=0 // loop_exit
    _

// kernel: vision_transformer_forward.16
$region0: #{vision_transformer_forward.16}
  #allocation0 [shape = 'u32[]', space=smem, size = 0x4, offset = 0x4, fixed_abs, tag = 'smem constant byte address 0x4 - core index']
  #allocation1 [shape = 'u32[144,128]{1,0:T(1,128)}', space=vmem, size = 0x12000, scoped, tag = 'internal scratch']
  %s0 = inlined_call_operand.vmem [shape: bf16[48,32], index: 0, kind: input, shape index: {}]
  %s1 = inlined_call_operand.vmem [shape: bf16[32,64], index: 1, kind: input, shape index: {}]
  %s2 = inlined_call_operand.vmem [shape: f32[1,64], index: 2, kind: input, shape index: {}]
  %s3 = inlined_call_operand.vmem [shape: bf16[48,64], index: 3, kind: output, shape index: {}]
  %s4 = sld [smem:[#allocation0]]
  $region22: #{vision_transformer_forward.16} parent=0
    _
  %s6 = ssub.s32 1, %s4
  %s7 = scalar_select 0, %s6, %s4
  // Predicated region
  $region2: #{vision_transformer_forward.16} parent=0 // pred_check
    _
  $region3: #{vision_transformer_forward.16} parent=0 // pred_check_branch
    %9 = sbr.rel (0) target = $region5
  $region4: #{vision_transformer_forward.16} parent=0 // pred_region
    _
  $region5: #{vision_transformer_forward.16} parent=0 // pred_fallthru
    _
  // Predicated region
  $region6: #{vision_transformer_forward.16} parent=0 // pred_check
    _
  $region7: #{vision_transformer_forward.16} parent=0 // pred_check_branch
    %11 = sbr.rel (0) target = $region9
  $region8: #{vision_transformer_forward.16} parent=0 // pred_region
    _
  $region9: #{vision_transformer_forward.16} parent=0 // pred_fallthru
    _
  // Predicated region
  $region10: #{vision_transformer_forward.16} parent=0 // pred_check
    _
  $region11: #{vision_transformer_forward.16} parent=0 // pred_check_branch
    %13 = sbr.rel (0) target = $region13
  $region12: #{vision_transformer_forward.16} parent=0 // pred_region
    _
  $region13: #{vision_transformer_forward.16} parent=0 // pred_fallthru
    _
  %v15 = vld [vmem:[%s0] sm:$0xf]
  %v16 = vld [vmem:[%s0 + $0x4] sm:$0xf]
  %v17 = vld [vmem:[%s0 + $0x8] sm:$0xf]
  %v18 = vld [vmem:[%s0 + $0xc] sm:$0xf]
  %v19 = vld [vmem:[%s0 + $0x10] sm:$0xf]
  %v20 = vld [vmem:[%s0 + $0x14] sm:$0xf]
  %v21 = vld [vmem:[%s1] sm:$0xf]
  %v22 = vld [vmem:[%s1 + $0x4] sm:$0xf]
  %v23 = vld [vmem:[%s1 + $0x8] sm:$0xf]
  %v24 = vld [vmem:[%s1 + $0xc] sm:$0xf]
  %v25 = vld [vmem:[%s2] sm:$0x1]
  %v27 = vlaneseq
  %v28 = vshrl.u32 %v27, 7
  %v29 = vsub.s32 0, %v28
  %v30 = vrot.slane %v25, %v29
  %v38 = vunpack.c.l.b16 %v15
  %v39 = vunpack.c.l.b16 %v16
  %v40 = vunpack.c.l.b16 %v17
  %v41 = vunpack.c.l.b16 %v18
  %v42 = vunpack.c.l.b16 %v19
  %v43 = vunpack.c.l.b16 %v20
  %v44 = vpack.c.b16 %v39, %v38
  %v45 = vpack.c.b16 %v41, %v40
  %v46 = vpack.c.b16 %v43, %v42
  %v51 = vunpack.c.l.b16 %v21
  %v52 = vunpack.c.l.b16 %v22
  %v53 = vunpack.c.l.b16 %v23
  %v54 = vunpack.c.l.b16 %v24
  %v55 = vpack.c.b16 %v52, %v51
  %v56 = vpack.c.b16 %v54, %v53
  %vm59 = vcmask 261120
  %v61 = vsel %vm59, %v44, 0
  %v64 = vsel %vm59, %v45, 0
  %v67 = vsel %vm59, %v46, 0
  %69 = vmatprep.subr.bf16.mxu0 0
  %70 = vmatpush1.bf16.msra.mxu0 %v55
  %71 = vmatprep.subr.bf16.mxu0 0
  %72 = vmatpush1.bf16.msra.mxu0 %v56
  %73 = vmatprep.subr.bf16.mxu0 0
  %74 = vmatpush1.bf16.msra.mxu0 0
  %75 = vmatprep.subr.bf16.mxu0 0
  %76 = vmatpush1.bf16.msra.mxu0 0
  %77 = vmatprep.subr.bf16.mxu0 0
  %78 = vmatpush1.bf16.msra.mxu0 0
  %79 = vmatprep.subr.bf16.mxu0 0
  %80 = vmatpush1.bf16.msra.mxu0 0
  %81 = vmatprep.subr.bf16.mxu0 0
  %82 = vmatpush1.bf16.msra.mxu0 0
  %83 = vmatprep.subr.bf16.mxu0 0
  %84 = vmatpush1.bf16.msra.mxu0 0
  %85 = vmatprep.subr.bf16.mxu0 0
  %86 = vmatpush1.bf16.msra.mxu0 0
  %87 = vmatprep.subr.bf16.mxu0 0
  %88 = vmatpush1.bf16.msra.mxu0 0
  %89 = vmatprep.subr.bf16.mxu0 0
  %90 = vmatpush1.bf16.msra.mxu0 0
  %91 = vmatprep.subr.bf16.mxu0 0
  %92 = vmatpush1.bf16.msra.mxu0 0
  %93 = vmatprep.subr.bf16.mxu0 0
  %94 = vmatpush1.bf16.msra.mxu0 0
  %95 = vmatprep.subr.bf16.mxu0 0
  %96 = vmatpush1.bf16.msra.mxu0 0
  %97 = vmatprep.subr.bf16.mxu0 0
  %98 = vmatpush1.bf16.msra.mxu0 0
  %99 = vmatprep.subr.bf16.mxu0 0
  %100 = vmatpush1.bf16.msra.mxu0 0
  %101 = vmatprep.mubr.bf16.mxu0 0
  %102 = vmatmul.mubr.bf16.gmra.mrb[0].mxu0 %v61
  %v103 = vpop.f32.mrb[0].mxu0
  %v104 = vadd.f32 %v30, %v103
  %v105 = vpop.f32.mrb[0].mxu0
  %v106 = vpop.f32.mrb[0].mxu0
  %v107 = vadd.f32 %v30, %v106
  %v108 = vpop.f32.mrb[0].mxu0
  %109 = vmatprep.mubr.bf16.mxu0 0
  %110 = vmatmul.mubr.bf16.gmra.mrb[0].mxu0 %v64
  %v111 = vpop.f32.mrb[0].mxu0
  %v112 = vadd.f32 %v30, %v111
  %v113 = vpop.f32.mrb[0].mxu0
  %v114 = vpop.f32.mrb[0].mxu0
  %v115 = vadd.f32 %v30, %v114
  %v116 = vpop.f32.mrb[0].mxu0
  %117 = vmatprep.mubr.bf16.mxu0 0
  %118 = vmatmul.mubr.bf16.gmra.mrb[0].mxu0 %v67
  %v119 = vpop.f32.mrb[0].mxu0
  %v120 = vadd.f32 %v30, %v119
  %v121 = vpop.f32.mrb[0].mxu0
  %v122 = vpop.f32.mrb[0].mxu0
  %v123 = vadd.f32 %v30, %v122
  %v124 = vpop.f32.mrb[0].mxu0
  %125 = vdwg.mxu0
  %v126 = vmul.f32 %v104, 0.5
  %v127 = vmul.f32 %v107, 0.5
  %v128 = vmul.f32 %v112, 0.5
  %v129 = vmul.f32 %v115, 0.5
  %v130 = vmul.f32 %v120, 0.5
  %v131 = vmul.f32 %v123, 0.5
  %v132 = vmul.f32 %v104, 0.70710677
  %v133 = vmul.f32 %v107, 0.70710677
  %v134 = vmul.f32 %v112, 0.70710677
  %v135 = vmul.f32 %v115, 0.70710677
  %v136 = vmul.f32 %v120, 0.70710677
  %v137 = vmul.f32 %v123, 0.70710677
  %v138 = vand.u32 2147483647, %v132
  %v139 = vand.u32 2147483647, %v133
  %v140 = vand.u32 2147483647, %v134
  %v141 = vand.u32 2147483647, %v135
  %v142 = vand.u32 2147483647, %v136
  %v143 = vand.u32 2147483647, %v137
  %v144 = vmul.f32 %v138, 0.3275911
  %v145 = vmul.f32 %v139, 0.3275911
  %v146 = vmul.f32 %v140, 0.3275911
  %v147 = vmul.f32 %v141, 0.3275911
  %v148 = vmul.f32 %v142, 0.3275911
  %v149 = vmul.f32 %v143, 0.3275911
  %v150 = vadd.f32 %v144, 1.0
  %v151 = vadd.f32 %v145, 1.0
  %v152 = vadd.f32 %v146, 1.0
  %v153 = vadd.f32 %v147, 1.0
  %v154 = vadd.f32 %v148, 1.0
  %v155 = vadd.f32 %v149, 1.0
  %v156 = vrcp.pop %v150
  %v157 = vmul.f32 1.0, %v156
  %v158 = vrcp.pop %v151
  %v159 = vmul.f32 1.0, %v158
  %v160 = vrcp.pop %v152
  %v161 = vmul.f32 1.0, %v160
  %v162 = vrcp.pop %v153
  %v163 = vmul.f32 1.0, %v162
  %v164 = vrcp.pop %v154
  %v165 = vmul.f32 1.0, %v164
  %v166 = vrcp.pop %v155
  %v167 = vmul.f32 1.0, %v166
  %v168 = vmul.f32 %v157, 1.0614054
  %v169 = vmul.f32 %v159, 1.0614054
  %v170 = vmul.f32 %v161, 1.0614054
  %v171 = vmul.f32 %v163, 1.0614054
  %v172 = vmul.f32 %v165, 1.0614054
  %v173 = vmul.f32 %v167, 1.0614054
  %v174 = vadd.f32 %v168, -1.4531521
  %v175 = vadd.f32 %v169, -1.4531521
  %v176 = vadd.f32 %v170, -1.4531521
  %v177 = vadd.f32 %v171, -1.4531521
  %v178 = vadd.f32 %v172, -1.4531521
  %v179 = vadd.f32 %v173, -1.4531521
  %v180 = vmul.f32 %v157, %v174
  %v181 = vmul.f32 %v159, %v175
  %v182 = vmul.f32 %v161, %v176
  %v183 = vmul.f32 %v163, %v177
  %v184 = vmul.f32 %v165, %v178
  %v185 = vmul.f32 %v167, %v179
  %v186 = vadd.f32 %v180, 1.4214138
  %v187 = vadd.f32 %v181, 1.4214138
  %v188 = vadd.f32 %v182, 1.4214138
  %v189 = vadd.f32 %v183, 1.4214138
  %v190 = vadd.f32 %v184, 1.4214138
  %v191 = vadd.f32 %v185, 1.4214138
  %v192 = vmul.f32 %v157, %v186
  %v193 = vmul.f32 %v159, %v187
  %v194 = vmul.f32 %v161, %v188
  %v195 = vmul.f32 %v163, %v189
  %v196 = vmul.f32 %v165, %v190
  %v197 = vmul.f32 %v167, %v191
  %v198 = vadd.f32 %v192, -0.28449672
  %v199 = vadd.f32 %v193, -0.28449672
  %v200 = vadd.f32 %v194, -0.28449672
  %v201 = vadd.f32 %v195, -0.28449672
  %v202 = vadd.f32 %v196, -0.28449672
  %v203 = vadd.f32 %v197, -0.28449672
  %v204 = vmul.f32 %v157, %v198
  %v205 = vmul.f32 %v159, %v199
  %v206 = vmul.f32 %v161, %v200
  %v207 = vmul.f32 %v163, %v201
  %v208 = vmul.f32 %v165, %v202
  %v209 = vmul.f32 %v167, %v203
  %v210 = vadd.f32 %v204, 0.2548296
  %v211 = vadd.f32 %v205, 0.2548296
  %v212 = vadd.f32 %v206, 0.2548296
  %v213 = vadd.f32 %v207, 0.2548296
  %v214 = vadd.f32 %v208, 0.2548296
  %v215 = vadd.f32 %v209, 0.2548296
  %v216 = vmul.f32 %v157, %v210
  %v217 = vmul.f32 %v159, %v211
  %v218 = vmul.f32 %v161, %v212
  %v219 = vmul.f32 %v163, %v213
  %v220 = vmul.f32 %v165, %v214
  %v221 = vmul.f32 %v167, %v215
  %v222 = vsub.f32 0.0, %v138
  %v223 = vsub.f32 0.0, %v139
  %v224 = vsub.f32 0.0, %v140
  %v225 = vsub.f32 0.0, %v141
  %v226 = vsub.f32 0.0, %v142
  %v227 = vsub.f32 0.0, %v143
  %v228 = vmul.f32 %v222, %v138
  %v229 = vmul.f32 %v223, %v139
  %v230 = vmul.f32 %v224, %v140
  %v231 = vmul.f32 %v225, %v141
  %v232 = vmul.f32 %v226, %v142
  %v233 = vmul.f32 %v227, %v143
  %v234 = vmul.f32 %v228, 1.442695
  %v235 = vpow.pop %v234
  %v236 = vmul.f32 %v229, 1.442695
  %v237 = vpow.pop %v236
  %v238 = vmul.f32 %v230, 1.442695
  %v239 = vpow.pop %v238
  %v240 = vmul.f32 %v231, 1.442695
  %v241 = vpow.pop %v240
  %v242 = vmul.f32 %v232, 1.442695
  %v243 = vpow.pop %v242
  %v244 = vmul.f32 %v233, 1.442695
  %v245 = vpow.pop %v244
  %v246 = vmul.f32 %v216, %v235
  %v247 = vmul.f32 %v217, %v237
  %v248 = vmul.f32 %v218, %v239
  %v249 = vmul.f32 %v219, %v241
  %v250 = vmul.f32 %v220, %v243
  %v251 = vmul.f32 %v221, %v245
  %v252 = vsub.f32 1.0, %v246
  %v253 = vsub.f32 1.0, %v247
  %v254 = vsub.f32 1.0, %v248
  %v255 = vsub.f32 1.0, %v249
  %v256 = vsub.f32 1.0, %v250
  %v257 = vsub.f32 1.0, %v251
  %vm258 = vcmp.ge.f32.partialorder %v132, 0.0
  %vm259 = vcmp.ge.f32.partialorder %v133, 0.0
  %vm260 = vcmp.ge.f32.partialorder %v134, 0.0
  %vm261 = vcmp.ge.f32.partialorder %v135, 0.0
  %vm262 = vcmp.ge.f32.partialorder %v136, 0.0
  %vm263 = vcmp.ge.f32.partialorder %v137, 0.0
  %v264 = vsub.f32 0.0, %v252
  %v265 = vsub.f32 0.0, %v253
  %v266 = vsub.f32 0.0, %v254
  %v267 = vsub.f32 0.0, %v255
  %v268 = vsub.f32 0.0, %v256
  %v269 = vsub.f32 0.0, %v257
  %v270 = vsel %vm258, %v252, %v264
  %v271 = vsel %vm259, %v253, %v265
  %v272 = vsel %vm260, %v254, %v266
  %v273 = vsel %vm261, %v255, %v267
  %v274 = vsel %vm262, %v256, %v268
  %v275 = vsel %vm263, %v257, %v269
  %v276 = vadd.f32 %v270, 1.0
  %v277 = vadd.f32 %v271, 1.0
  %v278 = vadd.f32 %v272, 1.0
  %v279 = vadd.f32 %v273, 1.0
  %v280 = vadd.f32 %v274, 1.0
  %v281 = vadd.f32 %v275, 1.0
  %v282 = vmul.f32 %v126, %v276
  %v283 = vmul.f32 %v127, %v277
  %v284 = vmul.f32 %v128, %v278
  %v285 = vmul.f32 %v129, %v279
  %v286 = vmul.f32 %v130, %v280
  %v287 = vmul.f32 %v131, %v281
  %v288 = vpack.c.bf16 %v283, %v282
  %v289 = vpack.c.bf16 %v285, %v284
  %v290 = vpack.c.bf16 %v287, %v286
  %v294 = vunpack.c.l.b16 %v288
  %v295 = vunpack.c.h.b16 %v288
  %v296 = vunpack.c.l.b16 %v289
  %v297 = vunpack.c.h.b16 %v289
  %v298 = vunpack.c.l.b16 %v290
  %v299 = vunpack.c.h.b16 %v290
  %v300 = vpack.c.b16 %v294, %v294
  %v301 = vpack.c.b16 %v295, %v295
  %v302 = vpack.c.b16 %v296, %v296
  %v303 = vpack.c.b16 %v297, %v297
  %v304 = vpack.c.b16 %v298, %v298
  %v305 = vpack.c.b16 %v299, %v299
  %vm312 = vcmask 519168
  %313 = vst.msk [vmem:[%s3] sm:$0xf] %vm312, %v300
  %314 = vst.msk [vmem:[%s3 + $0x4] sm:$0xf] %vm312, %v301
  %315 = vst.msk [vmem:[%s3 + $0x8] sm:$0xf] %vm312, %v302
  %316 = vst.msk [vmem:[%s3 + $0xc] sm:$0xf] %vm312, %v303
  %317 = vst.msk [vmem:[%s3 + $0x10] sm:$0xf] %vm312, %v304
  %318 = vst.msk [vmem:[%s3 + $0x14] sm:$0xf] %vm312, %v305
  // Predicated region
  $region14: #{vision_transformer_forward.16} parent=0 // pred_check
    _
  $region15: #{vision_transformer_forward.16} parent=0 // pred_check_branch
    %320 = sbr.rel (0) target = $region17
  $region16: #{vision_transformer_forward.16} parent=0 // pred_region
    _
  $region17: #{vision_transformer_forward.16} parent=0 // pred_fallthru
    _
  // Predicated region
  $region18: #{vision_transformer_forward.16} parent=0 // pred_check
    _
  $region19: #{vision_transformer_forward.16} parent=0 // pred_check_branch
    %322 = sbr.rel (0) target = $region21
  $region20: #{vision_transformer_forward.16} parent=0 // pred_region
    _
  $region21: #{vision_transformer_forward.16} parent=0 // pred_fallthru
    _

// kernel: vision_transformer_forward.15
$region0: #{vision_transformer_forward.15}
  #allocation0 [shape = 'u32[]', space=smem, size = 0x4, offset = 0x4, fixed_abs, tag = 'smem constant byte address 0x4 - core index']
  #allocation1 [shape = 'u32[144,128]{1,0:T(1,128)}', space=vmem, size = 0x12000, scoped, tag = 'internal scratch']
  %s0 = inlined_call_operand.vmem [shape: bf16[48,32], index: 0, kind: input, shape index: {}]
  %s1 = inlined_call_operand.vmem [shape: bf16[32,32], index: 1, kind: input, shape index: {}]
  %s2 = inlined_call_operand.vmem [shape: f32[1,32], index: 2, kind: input, shape index: {}]
  %s3 = inlined_call_operand.vmem [shape: bf16[48,32], index: 3, kind: input, shape index: {}]
  %s4 = inlined_call_operand.vmem [shape: f32[1,32], index: 4, kind: input, shape index: {}]
  %s5 = inlined_call_operand.vmem [shape: f32[1,32], index: 5, kind: input, shape index: {}]
  %s6 = inlined_call_operand.vmem [shape: bf16[48,32], index: 6, kind: output, shape index: {}]
  %s7 = sld [smem:[#allocation0]]
  $region34: #{vision_transformer_forward.15} parent=0
    _
  %s9 = ssub.s32 1, %s7
  %s10 = scalar_select 0, %s9, %s7
  // Predicated region
  $region2: #{vision_transformer_forward.15} parent=0 // pred_check
    _
  $region3: #{vision_transformer_forward.15} parent=0 // pred_check_branch
    %12 = sbr.rel (0) target = $region5
  $region4: #{vision_transformer_forward.15} parent=0 // pred_region
    _
  $region5: #{vision_transformer_forward.15} parent=0 // pred_fallthru
    _
  // Predicated region
  $region6: #{vision_transformer_forward.15} parent=0 // pred_check
    _
  $region7: #{vision_transformer_forward.15} parent=0 // pred_check_branch
    %14 = sbr.rel (0) target = $region9
  $region8: #{vision_transformer_forward.15} parent=0 // pred_region
    _
  $region9: #{vision_transformer_forward.15} parent=0 // pred_fallthru
    _
  // Predicated region
  $region10: #{vision_transformer_forward.15} parent=0 // pred_check
    _
  $region11: #{vision_transformer_forward.15} parent=0 // pred_check_branch
    %16 = sbr.rel (0) target = $region13
  $region12: #{vision_transformer_forward.15} parent=0 // pred_region
    _
  $region13: #{vision_transformer_forward.15} parent=0 // pred_fallthru
    _
  // Predicated region
  $region14: #{vision_transformer_forward.15} parent=0 // pred_check
    _
  $region15: #{vision_transformer_forward.15} parent=0 // pred_check_branch
    %18 = sbr.rel (0) target = $region17
  $region16: #{vision_transformer_forward.15} parent=0 // pred_region
    _
  $region17: #{vision_transformer_forward.15} parent=0 // pred_fallthru
    _
  // Predicated region
  $region18: #{vision_transformer_forward.15} parent=0 // pred_check
    _
  $region19: #{vision_transformer_forward.15} parent=0 // pred_check_branch
    %20 = sbr.rel (0) target = $region21
  $region20: #{vision_transformer_forward.15} parent=0 // pred_region
    _
  $region21: #{vision_transformer_forward.15} parent=0 // pred_fallthru
    _
  // Predicated region
  $region22: #{vision_transformer_forward.15} parent=0 // pred_check
    _
  $region23: #{vision_transformer_forward.15} parent=0 // pred_check_branch
    %22 = sbr.rel (0) target = $region25
  $region24: #{vision_transformer_forward.15} parent=0 // pred_region
    _
  $region25: #{vision_transformer_forward.15} parent=0 // pred_fallthru
    _
  %v24 = vld [vmem:[%s0] sm:$0xf]
  %v25 = vld [vmem:[%s0 + $0x4] sm:$0xf]
  %v26 = vld [vmem:[%s0 + $0x8] sm:$0xf]
  %v27 = vld [vmem:[%s0 + $0xc] sm:$0xf]
  %v28 = vld [vmem:[%s0 + $0x10] sm:$0xf]
  %v29 = vld [vmem:[%s0 + $0x14] sm:$0xf]
  %v30 = vld [vmem:[%s1] sm:$0xf]
  %v31 = vld [vmem:[%s1 + $0x4] sm:$0xf]
  %v32 = vld [vmem:[%s1 + $0x8] sm:$0xf]
  %v33 = vld [vmem:[%s1 + $0xc] sm:$0xf]
  %v34 = vld [vmem:[%s2] sm:$0x1]
  %v36 = vlaneseq
  %v37 = vshrl.u32 %v36, 7
  %v38 = vsub.s32 0, %v37
  %v39 = vrot.slane %v34, %v38
  %v47 = vunpack.c.l.b16 %v24
  %v48 = vunpack.c.l.b16 %v25
  %v49 = vunpack.c.l.b16 %v26
  %v50 = vunpack.c.l.b16 %v27
  %v51 = vunpack.c.l.b16 %v28
  %v52 = vunpack.c.l.b16 %v29
  %v53 = vpack.c.b16 %v48, %v47
  %v54 = vpack.c.b16 %v50, %v49
  %v55 = vpack.c.b16 %v52, %v51
  %v60 = vunpack.c.l.b16 %v30
  %v61 = vunpack.c.l.b16 %v31
  %v62 = vunpack.c.l.b16 %v32
  %v63 = vunpack.c.l.b16 %v33
  %v64 = vpack.c.b16 %v61, %v60
  %v65 = vpack.c.b16 %v63, %v62
  %vm68 = vcmask 261120
  %v70 = vsel %vm68, %v53, 0
  %v73 = vsel %vm68, %v54, 0
  %v76 = vsel %vm68, %v55, 0
  %78 = vmatprep.subr.bf16.mxu0 0
  %79 = vmatpush1.bf16.msra.mxu0 %v64
  %80 = vmatprep.subr.bf16.mxu0 0
  %81 = vmatpush1.bf16.msra.mxu0 %v65
  %82 = vmatprep.subr.bf16.mxu0 0
  %83 = vmatpush1.bf16.msra.mxu0 0
  %84 = vmatprep.subr.bf16.mxu0 0
  %85 = vmatpush1.bf16.msra.mxu0 0
  %86 = vmatprep.subr.bf16.mxu0 0
  %87 = vmatpush1.bf16.msra.mxu0 0
  %88 = vmatprep.subr.bf16.mxu0 0
  %89 = vmatpush1.bf16.msra.mxu0 0
  %90 = vmatprep.subr.bf16.mxu0 0
  %91 = vmatpush1.bf16.msra.mxu0 0
  %92 = vmatprep.subr.bf16.mxu0 0
  %93 = vmatpush1.bf16.msra.mxu0 0
  %94 = vmatprep.subr.bf16.mxu0 0
  %95 = vmatpush1.bf16.msra.mxu0 0
  %96 = vmatprep.subr.bf16.mxu0 0
  %97 = vmatpush1.bf16.msra.mxu0 0
  %98 = vmatprep.subr.bf16.mxu0 0
  %99 = vmatpush1.bf16.msra.mxu0 0
  %100 = vmatprep.subr.bf16.mxu0 0
  %101 = vmatpush1.bf16.msra.mxu0 0
  %102 = vmatprep.subr.bf16.mxu0 0
  %103 = vmatpush1.bf16.msra.mxu0 0
  %104 = vmatprep.subr.bf16.mxu0 0
  %105 = vmatpush1.bf16.msra.mxu0 0
  %106 = vmatprep.subr.bf16.mxu0 0
  %107 = vmatpush1.bf16.msra.mxu0 0
  %108 = vmatprep.subr.bf16.mxu0 0
  %109 = vmatpush1.bf16.msra.mxu0 0
  %110 = vmatprep.mubr.bf16.mxu0 0
  %111 = vmatmul.mubr.bf16.gmra.mrb[0].mxu0 %v70
  %v112 = vpop.f32.mrb[0].mxu0
  %v113 = vadd.f32 %v39, %v112
  %v114 = vpop.f32.mrb[0].mxu0
  %v115 = vpop.f32.mrb[0].mxu0
  %v116 = vadd.f32 %v39, %v115
  %v117 = vpop.f32.mrb[0].mxu0
  %118 = vmatprep.mubr.bf16.mxu0 0
  %119 = vmatmul.mubr.bf16.gmra.mrb[0].mxu0 %v73
  %v120 = vpop.f32.mrb[0].mxu0
  %v121 = vadd.f32 %v39, %v120
  %v122 = vpop.f32.mrb[0].mxu0
  %v123 = vpop.f32.mrb[0].mxu0
  %v124 = vadd.f32 %v39, %v123
  %v125 = vpop.f32.mrb[0].mxu0
  %126 = vmatprep.mubr.bf16.mxu0 0
  %127 = vmatmul.mubr.bf16.gmra.mrb[0].mxu0 %v76
  %v128 = vpop.f32.mrb[0].mxu0
  %v129 = vadd.f32 %v39, %v128
  %v130 = vpop.f32.mrb[0].mxu0
  %v131 = vpop.f32.mrb[0].mxu0
  %v132 = vadd.f32 %v39, %v131
  %v133 = vpop.f32.mrb[0].mxu0
  %134 = vdwg.mxu0
  %v135 = vld [vmem:[%s3] sm:$0xf]
  %v136 = vld [vmem:[%s3 + $0x4] sm:$0xf]
  %v137 = vld [vmem:[%s3 + $0x8] sm:$0xf]
  %v138 = vld [vmem:[%s3 + $0xc] sm:$0xf]
  %v139 = vld [vmem:[%s3 + $0x10] sm:$0xf]
  %v140 = vld [vmem:[%s3 + $0x14] sm:$0xf]
  %v141 = vunpack.c.l.bf16 %v135
  %v142 = vunpack.c.l.bf16 %v136
  %v143 = vunpack.c.l.bf16 %v137
  %v144 = vunpack.c.l.bf16 %v138
  %v145 = vunpack.c.l.bf16 %v139
  %v146 = vunpack.c.l.bf16 %v140
  %v147 = vadd.f32 %v113, %v141
  %v148 = vadd.f32 %v116, %v142
  %v149 = vadd.f32 %v121, %v143
  %v150 = vadd.f32 %v124, %v144
  %v151 = vadd.f32 %v129, %v145
  %v152 = vadd.f32 %v132, %v146
  %v153 = vsel %vm68, %v147, 0.0
  %154 = vadd.xlane.f32.xlu0 %v153
  %v155 = vpop.xlane.xlu0 %154
  %v156 = vsel %vm68, %v148, 0.0
  %157 = vadd.xlane.f32.xlu0 %v156
  %v158 = vpop.xlane.xlu0 %157
  %v159 = vsel %vm68, %v149, 0.0
  %160 = vadd.xlane.f32.xlu0 %v159
  %v161 = vpop.xlane.xlu0 %160
  %v162 = vsel %vm68, %v150, 0.0
  %163 = vadd.xlane.f32.xlu0 %v162
  %v164 = vpop.xlane.xlu0 %163
  %v165 = vsel %vm68, %v151, 0.0
  %166 = vadd.xlane.f32.xlu0 %v165
  %v167 = vpop.xlane.xlu0 %166
  %v168 = vsel %vm68, %v152, 0.0
  %169 = vadd.xlane.f32.xlu0 %v168
  %v170 = vpop.xlane.xlu0 %169
  %v171 = vrcp.pop 32.0
  %v172 = vmul.f32 %v155, %v171
  %v173 = vmul.f32 %v158, %v171
  %v174 = vmul.f32 %v161, %v171
  %v175 = vmul.f32 %v164, %v171
  %v176 = vmul.f32 %v167, %v171
  %v177 = vmul.f32 %v170, %v171
  %v178 = vsub.f32 %v147, %v172
  %v179 = vsub.f32 %v148, %v173
  %v180 = vsub.f32 %v149, %v174
  %v181 = vsub.f32 %v150, %v175
  %v182 = vsub.f32 %v151, %v176
  %v183 = vsub.f32 %v152, %v177
  %v184 = vmul.f32 %v178, %v178
  %v185 = vmul.f32 %v179, %v179
  %v186 = vmul.f32 %v180, %v180
  %v187 = vmul.f32 %v181, %v181
  %v188 = vmul.f32 %v182, %v182
  %v189 = vmul.f32 %v183, %v183
  %v190 = vsel %vm68, %v184, 0.0
  %191 = vadd.xlane.f32.xlu0 %v190
  %v192 = vpop.xlane.xlu0 %191
  %v193 = vsel %vm68, %v185, 0.0
  %194 = vadd.xlane.f32.xlu0 %v193
  %v195 = vpop.xlane.xlu0 %194
  %v196 = vsel %vm68, %v186, 0.0
  %197 = vadd.xlane.f32.xlu0 %v196
  %v198 = vpop.xlane.xlu0 %197
  %v199 = vsel %vm68, %v187, 0.0
  %200 = vadd.xlane.f32.xlu0 %v199
  %v201 = vpop.xlane.xlu0 %200
  %v202 = vsel %vm68, %v188, 0.0
  %203 = vadd.xlane.f32.xlu0 %v202
  %v204 = vpop.xlane.xlu0 %203
  %v205 = vsel %vm68, %v189, 0.0
  %206 = vadd.xlane.f32.xlu0 %v205
  %v207 = vpop.xlane.xlu0 %206
  %v208 = vmul.f32 %v192, %v171
  %v209 = vmul.f32 %v195, %v171
  %v210 = vmul.f32 %v198, %v171
  %v211 = vmul.f32 %v201, %v171
  %v212 = vmul.f32 %v204, %v171
  %v213 = vmul.f32 %v207, %v171
  %v214 = vadd.f32 %v208, 1e-05
  %v215 = vadd.f32 %v209, 1e-05
  %v216 = vadd.f32 %v210, 1e-05
  %v217 = vadd.f32 %v211, 1e-05
  %v218 = vadd.f32 %v212, 1e-05
  %v219 = vadd.f32 %v213, 1e-05
  %v220 = vrsqrt.pop %v214
  %v221 = vrsqrt.pop %v215
  %v222 = vrsqrt.pop %v216
  %v223 = vrsqrt.pop %v217
  %v224 = vrsqrt.pop %v218
  %v225 = vrsqrt.pop %v219
  %v226 = vmul.f32 %v178, %v220
  %v227 = vmul.f32 %v179, %v221
  %v228 = vmul.f32 %v180, %v222
  %v229 = vmul.f32 %v181, %v223
  %v230 = vmul.f32 %v182, %v224
  %v231 = vmul.f32 %v183, %v225
  %v232 = vld [vmem:[%s4] sm:$0x1]
  %v234 = vlaneseq
  %v235 = vshrl.u32 %v234, 7
  %v236 = vsub.s32 0, %v235
  %v237 = vrot.slane %v232, %v236
  %v239 = vmul.f32 %v226, %v237
  %v240 = vmul.f32 %v227, %v237
  %v241 = vmul.f32 %v228, %v237
  %v242 = vmul.f32 %v229, %v237
  %v243 = vmul.f32 %v230, %v237
  %v244 = vmul.f32 %v231, %v237
  %v245 = vld [vmem:[%s5] sm:$0x1]
  %v247 = vlaneseq
  %v248 = vshrl.u32 %v247, 7
  %v249 = vsub.s32 0, %v248
  %v250 = vrot.slane %v245, %v249
  %v252 = vadd.f32 %v239, %v250
  %v253 = vadd.f32 %v240, %v250
  %v254 = vadd.f32 %v241, %v250
  %v255 = vadd.f32 %v242, %v250
  %v256 = vadd.f32 %v243, %v250
  %v257 = vadd.f32 %v244, %v250
  %v258 = vpack.c.bf16 %v253, %v252
  %v259 = vpack.c.bf16 %v255, %v254
  %v260 = vpack.c.bf16 %v257, %v256
  %v264 = vunpack.c.l.b16 %v258
  %v265 = vunpack.c.h.b16 %v258
  %v266 = vunpack.c.l.b16 %v259
  %v267 = vunpack.c.h.b16 %v259
  %v268 = vunpack.c.l.b16 %v260
  %v269 = vunpack.c.h.b16 %v260
  %v270 = vpack.c.b16 %v264, %v264
  %v271 = vpack.c.b16 %v265, %v265
  %v272 = vpack.c.b16 %v266, %v266
  %v273 = vpack.c.b16 %v267, %v267
  %v274 = vpack.c.b16 %v268, %v268
  %v275 = vpack.c.b16 %v269, %v269
  %vm282 = vcmask 257024
  %283 = vst.msk [vmem:[%s6] sm:$0xf] %vm282, %v270
  %284 = vst.msk [vmem:[%s6 + $0x4] sm:$0xf] %vm282, %v271
  %285 = vst.msk [vmem:[%s6 + $0x8] sm:$0xf] %vm282, %v272
  %286 = vst.msk [vmem:[%s6 + $0xc] sm:$0xf] %vm282, %v273
  %287 = vst.msk [vmem:[%s6 + $0x10] sm:$0xf] %vm282, %v274
  %288 = vst.msk [vmem:[%s6 + $0x14] sm:$0xf] %vm282, %v275
  // Predicated region
  $region26: #{vision_transformer_forward.15} parent=0 // pred_check
    _
  $region27: #{vision_transformer_forward.15} parent=0 // pred_check_branch
    %290 = sbr.rel (0) target = $region29
  $region28: #{vision_transformer_forward.15} parent=0 // pred_region
    _
  $region29: #{vision_transformer_forward.15} parent=0 // pred_fallthru
    _
  // Predicated region
  $region30: #{vision_transformer_forward.15} parent=0 // pred_check
    _
  $region31: #{vision_transformer_forward.15} parent=0 // pred_check_branch
    %292 = sbr.rel (0) target = $region33
  $region32: #{vision_transformer_forward.15} parent=0 // pred_region
    _
  $region33: #{vision_transformer_forward.15} parent=0 // pred_fallthru
    _

// kernel: vision_transformer_forward.17
$region0: #{vision_transformer_forward.17}
  #allocation0 [shape = 'u32[]', space=smem, size = 0x4, offset = 0x4, fixed_abs, tag = 'smem constant byte address 0x4 - core index']
  #allocation1 [shape = 'u32[144,128]{1,0:T(1,128)}', space=vmem, size = 0x12000, scoped, tag = 'internal scratch']
  %s0 = inlined_call_operand.vmem [shape: bf16[48,64], index: 0, kind: input, shape index: {}]
  %s1 = inlined_call_operand.vmem [shape: bf16[64,32], index: 1, kind: input, shape index: {}]
  %s2 = inlined_call_operand.vmem [shape: f32[1,32], index: 2, kind: input, shape index: {}]
  %s3 = inlined_call_operand.vmem [shape: bf16[48,32], index: 3, kind: input, shape index: {}]
  %s4 = inlined_call_operand.vmem [shape: f32[1,32], index: 4, kind: input, shape index: {}]
  %s5 = inlined_call_operand.vmem [shape: f32[1,32], index: 5, kind: input, shape index: {}]
  %s6 = inlined_call_operand.vmem [shape: bf16[48,32], index: 6, kind: output, shape index: {}]
  %s7 = sld [smem:[#allocation0]]
  $region34: #{vision_transformer_forward.17} parent=0
    _
  %s9 = ssub.s32 1, %s7
  %s10 = scalar_select 0, %s9, %s7
  // Predicated region
  $region2: #{vision_transformer_forward.17} parent=0 // pred_check
    _
  $region3: #{vision_transformer_forward.17} parent=0 // pred_check_branch
    %12 = sbr.rel (0) target = $region5
  $region4: #{vision_transformer_forward.17} parent=0 // pred_region
    _
  $region5: #{vision_transformer_forward.17} parent=0 // pred_fallthru
    _
  // Predicated region
  $region6: #{vision_transformer_forward.17} parent=0 // pred_check
    _
  $region7: #{vision_transformer_forward.17} parent=0 // pred_check_branch
    %14 = sbr.rel (0) target = $region9
  $region8: #{vision_transformer_forward.17} parent=0 // pred_region
    _
  $region9: #{vision_transformer_forward.17} parent=0 // pred_fallthru
    _
  // Predicated region
  $region10: #{vision_transformer_forward.17} parent=0 // pred_check
    _
  $region11: #{vision_transformer_forward.17} parent=0 // pred_check_branch
    %16 = sbr.rel (0) target = $region13
  $region12: #{vision_transformer_forward.17} parent=0 // pred_region
    _
  $region13: #{vision_transformer_forward.17} parent=0 // pred_fallthru
    _
  // Predicated region
  $region14: #{vision_transformer_forward.17} parent=0 // pred_check
    _
  $region15: #{vision_transformer_forward.17} parent=0 // pred_check_branch
    %18 = sbr.rel (0) target = $region17
  $region16: #{vision_transformer_forward.17} parent=0 // pred_region
    _
  $region17: #{vision_transformer_forward.17} parent=0 // pred_fallthru
    _
  // Predicated region
  $region18: #{vision_transformer_forward.17} parent=0 // pred_check
    _
  $region19: #{vision_transformer_forward.17} parent=0 // pred_check_branch
    %20 = sbr.rel (0) target = $region21
  $region20: #{vision_transformer_forward.17} parent=0 // pred_region
    _
  $region21: #{vision_transformer_forward.17} parent=0 // pred_fallthru
    _
  // Predicated region
  $region22: #{vision_transformer_forward.17} parent=0 // pred_check
    _
  $region23: #{vision_transformer_forward.17} parent=0 // pred_check_branch
    %22 = sbr.rel (0) target = $region25
  $region24: #{vision_transformer_forward.17} parent=0 // pred_region
    _
  $region25: #{vision_transformer_forward.17} parent=0 // pred_fallthru
    _
  %v24 = vld [vmem:[%s0] sm:$0xf]
  %v25 = vld [vmem:[%s0 + $0x4] sm:$0xf]
  %v26 = vld [vmem:[%s0 + $0x8] sm:$0xf]
  %v27 = vld [vmem:[%s0 + $0xc] sm:$0xf]
  %v28 = vld [vmem:[%s0 + $0x10] sm:$0xf]
  %v29 = vld [vmem:[%s0 + $0x14] sm:$0xf]
  %v30 = vld [vmem:[%s1] sm:$0xf]
  %v31 = vld [vmem:[%s1 + $0x4] sm:$0xf]
  %v32 = vld [vmem:[%s1 + $0x8] sm:$0xf]
  %v33 = vld [vmem:[%s1 + $0xc] sm:$0xf]
  %v34 = vld [vmem:[%s1 + $0x10] sm:$0xf]
  %v35 = vld [vmem:[%s1 + $0x14] sm:$0xf]
  %v36 = vld [vmem:[%s1 + $0x18] sm:$0xf]
  %v37 = vld [vmem:[%s1 + $0x1c] sm:$0xf]
  %v38 = vld [vmem:[%s2] sm:$0x1]
  %v40 = vlaneseq
  %v41 = vshrl.u32 %v40, 7
  %v42 = vsub.s32 0, %v41
  %v43 = vrot.slane %v38, %v42
  %v51 = vunpack.c.l.b16 %v24
  %v52 = vunpack.c.l.b16 %v25
  %v53 = vunpack.c.l.b16 %v26
  %v54 = vunpack.c.l.b16 %v27
  %v55 = vunpack.c.l.b16 %v28
  %v56 = vunpack.c.l.b16 %v29
  %v57 = vpack.c.b16 %v52, %v51
  %v58 = vpack.c.b16 %v54, %v53
  %v59 = vpack.c.b16 %v56, %v55
  %v68 = vunpack.c.l.b16 %v30
  %v69 = vunpack.c.l.b16 %v31
  %v70 = vunpack.c.l.b16 %v32
  %v71 = vunpack.c.l.b16 %v33
  %v72 = vunpack.c.l.b16 %v34
  %v73 = vunpack.c.l.b16 %v35
  %v74 = vunpack.c.l.b16 %v36
  %v75 = vunpack.c.l.b16 %v37
  %v76 = vpack.c.b16 %v69, %v68
  %v77 = vpack.c.b16 %v71, %v70
  %v78 = vpack.c.b16 %v73, %v72
  %v79 = vpack.c.b16 %v75, %v74
  %vm84 = vcmask 523264
  %v86 = vsel %vm84, %v57, 0
  %v89 = vsel %vm84, %v58, 0
  %v92 = vsel %vm84, %v59, 0
  %94 = vmatprep.subr.bf16.mxu0 0
  %95 = vmatpush1.bf16.msra.mxu0 %v76
  %96 = vmatprep.subr.bf16.mxu0 0
  %97 = vmatpush1.bf16.msra.mxu0 %v77
  %98 = vmatprep.subr.bf16.mxu0 0
  %99 = vmatpush1.bf16.msra.mxu0 %v78
  %100 = vmatprep.subr.bf16.mxu0 0
  %101 = vmatpush1.bf16.msra.mxu0 %v79
  %102 = vmatprep.subr.bf16.mxu0 0
  %103 = vmatpush1.bf16.msra.mxu0 0
  %104 = vmatprep.subr.bf16.mxu0 0
  %105 = vmatpush1.bf16.msra.mxu0 0
  %106 = vmatprep.subr.bf16.mxu0 0
  %107 = vmatpush1.bf16.msra.mxu0 0
  %108 = vmatprep.subr.bf16.mxu0 0
  %109 = vmatpush1.bf16.msra.mxu0 0
  %110 = vmatprep.subr.bf16.mxu0 0
  %111 = vmatpush1.bf16.msra.mxu0 0
  %112 = vmatprep.subr.bf16.mxu0 0
  %113 = vmatpush1.bf16.msra.mxu0 0
  %114 = vmatprep.subr.bf16.mxu0 0
  %115 = vmatpush1.bf16.msra.mxu0 0
  %116 = vmatprep.subr.bf16.mxu0 0
  %117 = vmatpush1.bf16.msra.mxu0 0
  %118 = vmatprep.subr.bf16.mxu0 0
  %119 = vmatpush1.bf16.msra.mxu0 0
  %120 = vmatprep.subr.bf16.mxu0 0
  %121 = vmatpush1.bf16.msra.mxu0 0
  %122 = vmatprep.subr.bf16.mxu0 0
  %123 = vmatpush1.bf16.msra.mxu0 0
  %124 = vmatprep.subr.bf16.mxu0 0
  %125 = vmatpush1.bf16.msra.mxu0 0
  %126 = vmatprep.mubr.bf16.mxu0 0
  %127 = vmatmul.mubr.bf16.gmra.mrb[0].mxu0 %v86
  %v128 = vpop.f32.mrb[0].mxu0
  %v129 = vadd.f32 %v43, %v128
  %v130 = vpop.f32.mrb[0].mxu0
  %v131 = vpop.f32.mrb[0].mxu0
  %v132 = vadd.f32 %v43, %v131
  %v133 = vpop.f32.mrb[0].mxu0
  %134 = vmatprep.mubr.bf16.mxu0 0
  %135 = vmatmul.mubr.bf16.gmra.mrb[0].mxu0 %v89
  %v136 = vpop.f32.mrb[0].mxu0
  %v137 = vadd.f32 %v43, %v136
  %v138 = vpop.f32.mrb[0].mxu0
  %v139 = vpop.f32.mrb[0].mxu0
  %v140 = vadd.f32 %v43, %v139
  %v141 = vpop.f32.mrb[0].mxu0
  %142 = vmatprep.mubr.bf16.mxu0 0
  %143 = vmatmul.mubr.bf16.gmra.mrb[0].mxu0 %v92
  %v144 = vpop.f32.mrb[0].mxu0
  %v145 = vadd.f32 %v43, %v144
  %v146 = vpop.f32.mrb[0].mxu0
  %v147 = vpop.f32.mrb[0].mxu0
  %v148 = vadd.f32 %v43, %v147
  %v149 = vpop.f32.mrb[0].mxu0
  %150 = vdwg.mxu0
  %v151 = vld [vmem:[%s3] sm:$0xf]
  %v152 = vld [vmem:[%s3 + $0x4] sm:$0xf]
  %v153 = vld [vmem:[%s3 + $0x8] sm:$0xf]
  %v154 = vld [vmem:[%s3 + $0xc] sm:$0xf]
  %v155 = vld [vmem:[%s3 + $0x10] sm:$0xf]
  %v156 = vld [vmem:[%s3 + $0x14] sm:$0xf]
  %v157 = vunpack.c.l.bf16 %v151
  %v158 = vunpack.c.l.bf16 %v152
  %v159 = vunpack.c.l.bf16 %v153
  %v160 = vunpack.c.l.bf16 %v154
  %v161 = vunpack.c.l.bf16 %v155
  %v162 = vunpack.c.l.bf16 %v156
  %v163 = vadd.f32 %v129, %v157
  %v164 = vadd.f32 %v132, %v158
  %v165 = vadd.f32 %v137, %v159
  %v166 = vadd.f32 %v140, %v160
  %v167 = vadd.f32 %v145, %v161
  %v168 = vadd.f32 %v148, %v162
  %vm169 = vcmask 261120
  %v170 = vsel %vm169, %v163, 0.0
  %171 = vadd.xlane.f32.xlu0 %v170
  %v172 = vpop.xlane.xlu0 %171
  %v173 = vsel %vm169, %v164, 0.0
  %174 = vadd.xlane.f32.xlu0 %v173
  %v175 = vpop.xlane.xlu0 %174
  %v176 = vsel %vm169, %v165, 0.0
  %177 = vadd.xlane.f32.xlu0 %v176
  %v178 = vpop.xlane.xlu0 %177
  %v179 = vsel %vm169, %v166, 0.0
  %180 = vadd.xlane.f32.xlu0 %v179
  %v181 = vpop.xlane.xlu0 %180
  %v182 = vsel %vm169, %v167, 0.0
  %183 = vadd.xlane.f32.xlu0 %v182
  %v184 = vpop.xlane.xlu0 %183
  %v185 = vsel %vm169, %v168, 0.0
  %186 = vadd.xlane.f32.xlu0 %v185
  %v187 = vpop.xlane.xlu0 %186
  %v188 = vrcp.pop 32.0
  %v189 = vmul.f32 %v172, %v188
  %v190 = vmul.f32 %v175, %v188
  %v191 = vmul.f32 %v178, %v188
  %v192 = vmul.f32 %v181, %v188
  %v193 = vmul.f32 %v184, %v188
  %v194 = vmul.f32 %v187, %v188
  %v195 = vsub.f32 %v163, %v189
  %v196 = vsub.f32 %v164, %v190
  %v197 = vsub.f32 %v165, %v191
  %v198 = vsub.f32 %v166, %v192
  %v199 = vsub.f32 %v167, %v193
  %v200 = vsub.f32 %v168, %v194
  %v201 = vmul.f32 %v195, %v195
  %v202 = vmul.f32 %v196, %v196
  %v203 = vmul.f32 %v197, %v197
  %v204 = vmul.f32 %v198, %v198
  %v205 = vmul.f32 %v199, %v199
  %v206 = vmul.f32 %v200, %v200
  %v207 = vsel %vm169, %v201, 0.0
  %208 = vadd.xlane.f32.xlu0 %v207
  %v209 = vpop.xlane.xlu0 %208
  %v210 = vsel %vm169, %v202, 0.0
  %211 = vadd.xlane.f32.xlu0 %v210
  %v212 = vpop.xlane.xlu0 %211
  %v213 = vsel %vm169, %v203, 0.0
  %214 = vadd.xlane.f32.xlu0 %v213
  %v215 = vpop.xlane.xlu0 %214
  %v216 = vsel %vm169, %v204, 0.0
  %217 = vadd.xlane.f32.xlu0 %v216
  %v218 = vpop.xlane.xlu0 %217
  %v219 = vsel %vm169, %v205, 0.0
  %220 = vadd.xlane.f32.xlu0 %v219
  %v221 = vpop.xlane.xlu0 %220
  %v222 = vsel %vm169, %v206, 0.0
  %223 = vadd.xlane.f32.xlu0 %v222
  %v224 = vpop.xlane.xlu0 %223
  %v225 = vmul.f32 %v209, %v188
  %v226 = vmul.f32 %v212, %v188
  %v227 = vmul.f32 %v215, %v188
  %v228 = vmul.f32 %v218, %v188
  %v229 = vmul.f32 %v221, %v188
  %v230 = vmul.f32 %v224, %v188
  %v231 = vadd.f32 %v225, 1e-05
  %v232 = vadd.f32 %v226, 1e-05
  %v233 = vadd.f32 %v227, 1e-05
  %v234 = vadd.f32 %v228, 1e-05
  %v235 = vadd.f32 %v229, 1e-05
  %v236 = vadd.f32 %v230, 1e-05
  %v237 = vrsqrt.pop %v231
  %v238 = vrsqrt.pop %v232
  %v239 = vrsqrt.pop %v233
  %v240 = vrsqrt.pop %v234
  %v241 = vrsqrt.pop %v235
  %v242 = vrsqrt.pop %v236
  %v243 = vmul.f32 %v195, %v237
  %v244 = vmul.f32 %v196, %v238
  %v245 = vmul.f32 %v197, %v239
  %v246 = vmul.f32 %v198, %v240
  %v247 = vmul.f32 %v199, %v241
  %v248 = vmul.f32 %v200, %v242
  %v249 = vld [vmem:[%s4] sm:$0x1]
  %v251 = vlaneseq
  %v252 = vshrl.u32 %v251, 7
  %v253 = vsub.s32 0, %v252
  %v254 = vrot.slane %v249, %v253
  %v256 = vmul.f32 %v243, %v254
  %v257 = vmul.f32 %v244, %v254
  %v258 = vmul.f32 %v245, %v254
  %v259 = vmul.f32 %v246, %v254
  %v260 = vmul.f32 %v247, %v254
  %v261 = vmul.f32 %v248, %v254
  %v262 = vld [vmem:[%s5] sm:$0x1]
  %v264 = vlaneseq
  %v265 = vshrl.u32 %v264, 7
  %v266 = vsub.s32 0, %v265
  %v267 = vrot.slane %v262, %v266
  %v269 = vadd.f32 %v256, %v267
  %v270 = vadd.f32 %v257, %v267
  %v271 = vadd.f32 %v258, %v267
  %v272 = vadd.f32 %v259, %v267
  %v273 = vadd.f32 %v260, %v267
  %v274 = vadd.f32 %v261, %v267
  %v275 = vpack.c.bf16 %v270, %v269
  %v276 = vpack.c.bf16 %v272, %v271
  %v277 = vpack.c.bf16 %v274, %v273
  %v281 = vunpack.c.l.b16 %v275
  %v282 = vunpack.c.h.b16 %v275
  %v283 = vunpack.c.l.b16 %v276
  %v284 = vunpack.c.h.b16 %v276
  %v285 = vunpack.c.l.b16 %v277
  %v286 = vunpack.c.h.b16 %v277
  %v287 = vpack.c.b16 %v281, %v281
  %v288 = vpack.c.b16 %v282, %v282
  %v289 = vpack.c.b16 %v283, %v283
  %v290 = vpack.c.b16 %v284, %v284
  %v291 = vpack.c.b16 %v285, %v285
  %v292 = vpack.c.b16 %v286, %v286
  %vm299 = vcmask 257024
  %300 = vst.msk [vmem:[%s6] sm:$0xf] %vm299, %v287
  %301 = vst.msk [vmem:[%s6 + $0x4] sm:$0xf] %vm299, %v288
  %302 = vst.msk [vmem:[%s6 + $0x8] sm:$0xf] %vm299, %v289
  %303 = vst.msk [vmem:[%s6 + $0xc] sm:$0xf] %vm299, %v290
  %304 = vst.msk [vmem:[%s6 + $0x10] sm:$0xf] %vm299, %v291
  %305 = vst.msk [vmem:[%s6 + $0x14] sm:$0xf] %vm299, %v292
  // Predicated region
  $region26: #{vision_transformer_forward.17} parent=0 // pred_check
    _
  $region27: #{vision_transformer_forward.17} parent=0 // pred_check_branch
    %307 = sbr.rel (0) target = $region29
  $region28: #{vision_transformer_forward.17} parent=0 // pred_region
    _
  $region29: #{vision_transformer_forward.17} parent=0 // pred_fallthru
    _
  // Predicated region
  $region30: #{vision_transformer_forward.17} parent=0 // pred_check
    _
  $region31: #{vision_transformer_forward.17} parent=0 // pred_check_branch
    %309 = sbr.rel (0) target = $region33
  $region32: #{vision_transformer_forward.17} parent=0 // pred_region
    _
  $region33: #{vision_transformer_forward.17} parent=0 // pred_fallthru
    _

// kernel: vision_transformer_forward.23
$region0: #{vision_transformer_forward.23}
  #allocation0 [shape = 'u32[]', space=smem, size = 0x4, offset = 0x4, fixed_abs, tag = 'smem constant byte address 0x4 - core index']
  #allocation1 [shape = 'u32[144,128]{1,0:T(1,128)}', space=vmem, size = 0x12000, scoped, tag = 'internal scratch']
  %s0 = inlined_call_operand.vmem [shape: bf16[2,32], index: 0, kind: input, shape index: {}]
  %s1 = inlined_call_operand.vmem [shape: f32[1,32], index: 1, kind: input, shape index: {}]
  %s2 = inlined_call_operand.vmem [shape: f32[1,32], index: 2, kind: input, shape index: {}]
  %s3 = inlined_call_operand.vmem [shape: bf16[32,8], index: 3, kind: input, shape index: {}]
  %s4 = inlined_call_operand.vmem [shape: f32[1,8], index: 4, kind: input, shape index: {}]
  %s5 = inlined_call_operand.hbm [shape: f32[2,8], index: 5, kind: output, shape index: {}]
  %s6 = sld [smem:[#allocation0]]
  $region30: #{vision_transformer_forward.23} parent=0
    _
  %s8 = ssub.s32 1, %s6
  %s9 = scalar_select 0, %s8, %s6
  $region1: #{vision_transformer_forward.23} parent=0
    #allocation2 [shape = 'u8[1024]{0}', space=vmem, size = 0x400, scoped, tag = 'output window, operand 0, single buffered']
    #allocation3 [shape = 's32[1]{0}', space=sflag, size = 0x4, scoped, tag = 'scoped memory for vision_transformer_forward.23']
    %10 = vsyncpa [#allocation3], 0
    // Predicated region
    $region2: #{vision_transformer_forward.23} parent=1 // pred_check
      _
    $region3: #{vision_transformer_forward.23} parent=1 // pred_check_branch
      %12 = sbr.rel (0) target = $region5
    $region4: #{vision_transformer_forward.23} parent=1 // pred_region
      _
    $region5: #{vision_transformer_forward.23} parent=1 // pred_fallthru
      _
    // Predicated region
    $region6: #{vision_transformer_forward.23} parent=1 // pred_check
      _
    $region7: #{vision_transformer_forward.23} parent=1 // pred_check_branch
      %14 = sbr.rel (0) target = $region9
    $region8: #{vision_transformer_forward.23} parent=1 // pred_region
      _
    $region9: #{vision_transformer_forward.23} parent=1 // pred_fallthru
      _
    // Predicated region
    $region10: #{vision_transformer_forward.23} parent=1 // pred_check
      _
    $region11: #{vision_transformer_forward.23} parent=1 // pred_check_branch
      %16 = sbr.rel (0) target = $region13
    $region12: #{vision_transformer_forward.23} parent=1 // pred_region
      _
    $region13: #{vision_transformer_forward.23} parent=1 // pred_fallthru
      _
    // Predicated region
    $region14: #{vision_transformer_forward.23} parent=1 // pred_check
      _
    $region15: #{vision_transformer_forward.23} parent=1 // pred_check_branch
      %18 = sbr.rel (0) target = $region17
    $region16: #{vision_transformer_forward.23} parent=1 // pred_region
      _
    $region17: #{vision_transformer_forward.23} parent=1 // pred_fallthru
      _
    // Predicated region
    $region18: #{vision_transformer_forward.23} parent=1 // pred_check
      _
    $region19: #{vision_transformer_forward.23} parent=1 // pred_check_branch
      %20 = sbr.rel (0) target = $region21
    $region20: #{vision_transformer_forward.23} parent=1 // pred_region
      _
    $region21: #{vision_transformer_forward.23} parent=1 // pred_fallthru
      _
    %v22 = vld [vmem:[%s0] sm:$0x1]
    %v23 = vunpack.c.l.bf16 %v22
    %vm24 = vcmask 254976
    %v25 = vsel %vm24, %v23, 0.0
    %26 = vadd.xlane.f32.xlu0 %v25
    %v27 = vpop.xlane.xlu0 %26
    %v28 = vrcp.pop 32.0
    %v29 = vmul.f32 %v27, %v28
    %v30 = vsub.f32 %v23, %v29
    %v31 = vmul.f32 %v30, %v30
    %v32 = vsel %vm24, %v31, 0.0
    %33 = vadd.xlane.f32.xlu0 %v32
    %v34 = vpop.xlane.xlu0 %33
    %v35 = vmul.f32 %v34, %v28
    %v36 = vadd.f32 %v35, 1e-05
    %v37 = vrsqrt.pop %v36
    %v38 = vmul.f32 %v30, %v37
    %v39 = vld [vmem:[%s1] sm:$0x1]
    %v41 = vlaneseq
    %v42 = vshrl.u32 %v41, 7
    %v43 = vsub.s32 0, %v42
    %v44 = vrot.slane %v39, %v43
    %v46 = vmul.f32 %v38, %v44
    %v47 = vld [vmem:[%s2] sm:$0x1]
    %v49 = vlaneseq
    %v50 = vshrl.u32 %v49, 7
    %v51 = vsub.s32 0, %v50
    %v52 = vrot.slane %v47, %v51
    %v54 = vadd.f32 %v46, %v52
    %v55 = vpack.c.bf16 %v54, %v54
    %v56 = vld [vmem:[%s3] sm:$0xf]
    %v57 = vld [vmem:[%s3 + $0x4] sm:$0xf]
    %v58 = vld [vmem:[%s3 + $0x8] sm:$0xf]
    %v59 = vld [vmem:[%s3 + $0xc] sm:$0xf]
    %v60 = vld [vmem:[%s4] sm:$0x1]
    %v62 = vlaneseq
    %v63 = vshrl.u32 %v62, 7
    %v64 = vsub.s32 0, %v63
    %v65 = vrot.slane %v60, %v64
    %v71 = vunpack.c.l.b16 %v56
    %v72 = vunpack.c.l.b16 %v57
    %v73 = vunpack.c.l.b16 %v58
    %v74 = vunpack.c.l.b16 %v59
    %v75 = vpack.c.b16 %v72, %v71
    %v76 = vpack.c.b16 %v74, %v73
    %vm79 = vcmask 261120
    %v81 = vsel %vm79, %v55, 0
    %83 = vmatprep.subr.bf16.mxu0 0
    %84 = vmatpush1.bf16.msra.mxu0 %v75
    %85 = vmatprep.subr.bf16.mxu0 0
    %86 = vmatpush1.bf16.msra.mxu0 %v76
    %87 = vmatprep.subr.bf16.mxu0 0
    %88 = vmatpush1.bf16.msra.mxu0 0
    %89 = vmatprep.subr.bf16.mxu0 0
    %90 = vmatpush1.bf16.msra.mxu0 0
    %91 = vmatprep.subr.bf16.mxu0 0
    %92 = vmatpush1.bf16.msra.mxu0 0
    %93 = vmatprep.subr.bf16.mxu0 0
    %94 = vmatpush1.bf16.msra.mxu0 0
    %95 = vmatprep.subr.bf16.mxu0 0
    %96 = vmatpush1.bf16.msra.mxu0 0
    %97 = vmatprep.subr.bf16.mxu0 0
    %98 = vmatpush1.bf16.msra.mxu0 0
    %99 = vmatprep.subr.bf16.mxu0 0
    %100 = vmatpush1.bf16.msra.mxu0 0
    %101 = vmatprep.subr.bf16.mxu0 0
    %102 = vmatpush1.bf16.msra.mxu0 0
    %103 = vmatprep.subr.bf16.mxu0 0
    %104 = vmatpush1.bf16.msra.mxu0 0
    %105 = vmatprep.subr.bf16.mxu0 0
    %106 = vmatpush1.bf16.msra.mxu0 0
    %107 = vmatprep.subr.bf16.mxu0 0
    %108 = vmatpush1.bf16.msra.mxu0 0
    %109 = vmatprep.subr.bf16.mxu0 0
    %110 = vmatpush1.bf16.msra.mxu0 0
    %111 = vmatprep.subr.bf16.mxu0 0
    %112 = vmatpush1.bf16.msra.mxu0 0
    %113 = vmatprep.subr.bf16.mxu0 0
    %114 = vmatpush1.bf16.msra.mxu0 0
    %115 = vmatprep.mubr.bf16.mxu0 0
    %116 = vmatmul.mubr.bf16.gmra.mrb[0].mxu0 %v81
    %v117 = vpop.f32.mrb[0].mxu0
    %v118 = vadd.f32 %v65, %v117
    %v119 = vpop.f32.mrb[0].mxu0
    %v120 = vpop.f32.mrb[0].mxu0
    %v121 = vpop.f32.mrb[0].mxu0
    %122 = vdwg.mxu0
    %v123 = vmul.f32 %v118, 0.5
    %v124 = vmul.f32 %v118, 0.70710677
    %v125 = vand.u32 2147483647, %v124
    %v126 = vmul.f32 %v125, 0.3275911
    %v127 = vadd.f32 %v126, 1.0
    %v128 = vrcp.pop %v127
    %v129 = vmul.f32 1.0, %v128
    %v130 = vmul.f32 %v129, 1.0614054
    %v131 = vadd.f32 %v130, -1.4531521
    %v132 = vmul.f32 %v129, %v131
    %v133 = vadd.f32 %v132, 1.4214138
    %v134 = vmul.f32 %v129, %v133
    %v135 = vadd.f32 %v134, -0.28449672
    %v136 = vmul.f32 %v129, %v135
    %v137 = vadd.f32 %v136, 0.2548296
    %v138 = vmul.f32 %v129, %v137
    %v139 = vsub.f32 0.0, %v125
    %v140 = vmul.f32 %v139, %v125
    %v141 = vmul.f32 %v140, 1.442695
    %v142 = vpow.pop %v141
    %v143 = vmul.f32 %v138, %v142
    %v144 = vsub.f32 1.0, %v143
    %vm145 = vcmp.ge.f32.partialorder %v124, 0.0
    %v146 = vsub.f32 0.0, %v144
    %v147 = vsel %vm145, %v144, %v146
    %v148 = vadd.f32 %v147, 1.0
    %v149 = vmul.f32 %v123, %v148
    %vm150 = vcmask 58368
    %151 = vst.msk [vmem:[#allocation2] sm:$0x3] %vm150, %v149
    // Predicated region
    $region22: #{vision_transformer_forward.23} parent=1 // pred_check
      _
    $region23: #{vision_transformer_forward.23} parent=1 // pred_check_branch
      %153 = sbr.rel (0) target = $region25
    $region24: #{vision_transformer_forward.23} parent=1 // pred_region
      %s155 = ssub.s32 32, 32
      %156 = vsyncadd [#allocation3], %s155
      %s158 = sshll.u32 [#allocation2], 4
      %s159 = int_to_ptr.vmem [resolvable:$true] %s158
      %161 = dma.vmem_to_hbm [thread:$0]  %s159, 32, %s5, [#allocation3]
    $region25: #{vision_transformer_forward.23} parent=1 // pred_fallthru
      _
    // Predicated region
    $region26: #{vision_transformer_forward.23} parent=1 // pred_check
      _
    $region27: #{vision_transformer_forward.23} parent=1 // pred_check_branch
      %163 = sbr.rel (0) target = $region29
    $region28: #{vision_transformer_forward.23} parent=1 // pred_region
      %164 = dma.done [#allocation3], 32
    $region29: #{vision_transformer_forward.23} parent=1 // pred_fallthru
      _
    %165 = vsyncpa [#allocation3], 1

</llo_original>
